<compile_context>
chip_gen: v6e
topology: v6e:2x2x1
jax: 0.10.0
libtpu: 0.0.40
codegen_flags: <defaults>
</compile_context>

<pallas_src>
import jax
import jax.numpy as jnp
from jax import lax
from jax.experimental import pallas as pl
from jax.experimental.pallas import tpu as pltpu


def enc_kernel(y_ref, w1_ref, b1_ref, w2_ref, b2_ref, o_ref):
    # Fused hot path: two MXU matmuls + bias + tanh + sigmoid, all on one tile.
    y = y_ref[...]
    prec = (lax.Precision.HIGHEST if y.dtype == jnp.float32
            else lax.Precision.DEFAULT)
    h = jnp.dot(y, w1_ref[...], preferred_element_type=jnp.float32,
                precision=prec)
    h = jnp.tanh(h + b1_ref[...])            # f32 epilogue
    h = h.astype(w2_ref.dtype)               # feed MXU in the weights' dtype
    z = jnp.dot(h, w2_ref[...], preferred_element_type=jnp.float32,
                precision=prec)
    z = z + b2_ref[...]
    # sigmoid(z) == 0.5 * tanh(0.5 * z) + 0.5  -> single EUP push, no divide.
    o_ref[...] = (0.5 * jnp.tanh(0.5 * z) + 0.5).astype(o_ref.dtype)


def _round_up(x, m):
    return ((x + m - 1) // m) * m


def _tpu_generation():
    try:
        kind = jax.devices()[0].device_kind.lower()
    except Exception:
        return "unknown"
    if "v5" in kind:
        return "v5"        # v5e/v5p: 16 MiB scoped-VMEM default, 128-wide MXU
    if "v6" in kind:
        return "v6e"
    if "v7" in kind or "7x" in kind:
        return "v7x"
    return "unknown"


def _lane_bytes(cols, dtype):
    # One logical row occupies round_up(cols, 128) lanes in VMEM/vregs.
    return _round_up(max(int(cols), 1), 128) * jnp.dtype(dtype).itemsize


def _tile_bytes(rows, cols, dtype):
    # Full (rows, cols) tile, padded to the native (sublane, 128) tiling.
    itemsize = jnp.dtype(dtype).itemsize
    sub = 8 * max(1, 4 // itemsize)          # 8 sublanes for 32-bit, 16 for 16-bit
    return (_round_up(max(int(rows), 1), sub)
            * _round_up(max(int(cols), 1), 128) * itemsize)


def enc_forward(y, w1, b1, w2, b2, *,
                block_rows=None,
                use_bf16_matmul=None,
                pack=None,
                core_parallel=None):
    """Forward pass of Enc.

    y : (B, d_y)       w1: (d_y, d_hid)   b1: (1, d_hid)
                       w2: (d_hid, d_x)   b2: (1, d_x)
    returns (B, d_x) in y.dtype.
    """
    B, d_y = y.shape
    d_hid = w1.shape[1]
    d_x = w2.shape[1]
    out_dtype = y.dtype
    gen = _tpu_generation()

    # ---- per-generation defaults -------------------------------------------
    if use_bf16_matmul is None:
        # Kernel is HBM-bound on the y stream; bf16 halves streamed input bytes
        # on v6e/v7x (native bf16 VPU/EUP there).  v5-class keeps f32.
        use_bf16_matmul = gen in ("v6e", "v7x")
    if pack is None:
        # Lane-dense packing factor (8x redundant MACs are free on v6e/v7x;
        # v5's f32 MXU is slower, so pack less aggressively there).
        pack = 4 if gen in ("v5", "unknown") else 8
    pack = max(1, int(pack))

    in_dtype = jnp.bfloat16 if use_bf16_matmul else y.dtype
    w_dtype = jnp.bfloat16 if use_bf16_matmul else w1.dtype

    # ---- block-diagonal (lane-dense) weights --------------------------------
    # NOTE: in a real training loop build these once outside the step.
    if pack > 1:
        eye = jnp.eye(pack, dtype=w1.dtype)
        w1p = jnp.kron(eye, w1)                       # (pack*d_y,  pack*d_hid)
        w2p = jnp.kron(eye, w2)                       # (pack*d_hid, pack*d_x)
        b1p = jnp.tile(b1.astype(jnp.float32), (1, pack))
        b2p = jnp.tile(b2.astype(jnp.float32), (1, pack))
    else:
        w1p, w2p = w1, w2
        b1p, b2p = b1.astype(jnp.float32), b2.astype(jnp.float32)
    w1p = w1p.astype(w_dtype)
    w2p = w2p.astype(w_dtype)

    feat_in, feat_hid, feat_out = pack * d_y, pack * d_hid, pack * d_x

    # ---- pack y: (B, d_y) -> (ceil(B/pack), pack*d_y) ------------------------
    Bp = _round_up(B, pack)
    y_p = y
    if Bp != B:
        # At most pack-1 rows; tile-multiple padding is NOT needed (cdiv grid,
        # the partial trailing block is masked by Pallas).
        y_p = jnp.pad(y_p, ((0, Bp - B), (0, 0)))
    y_p = y_p.astype(in_dtype).reshape(Bp // pack, feat_in)  # free row-major reshape
    n_rows = Bp // pack

    # ---- batch tile from lane/sublane-PADDED VMEM sizes ----------------------
    row_mult = 16 if jnp.dtype(in_dtype).itemsize == 2 else 8
    budget = (12 << 20) if gen in ("v5", "unknown") else (24 << 20)  # < scoped 16/32 MiB
    cap_rows = 2048 if gen in ("v5", "unknown") else 4096            # original rows / step
    cap_p = max(row_mult, (cap_rows // pack // row_mult) * row_mult)

    per_row = (2 * _lane_bytes(feat_in, in_dtype)       # double-buffered y tile
               + 2 * _lane_bytes(feat_out, out_dtype)   # double-buffered out tile
               + _lane_bytes(feat_hid, jnp.float32)     # h intermediate
               + _lane_bytes(feat_out, jnp.float32))    # z intermediate
    w_bytes = 2 * (_tile_bytes(feat_in, feat_hid, w_dtype)
                   + _tile_bytes(feat_hid, feat_out, w_dtype)
                   + _tile_bytes(1, feat_hid, jnp.float32)
                   + _tile_bytes(1, feat_out, jnp.float32))
    avail = max(budget - w_bytes, 256 * 1024)

    if block_rows is not None:
        tb_p = max(row_mult, _round_up(max(1, block_rows // pack), row_mult))
    else:
        tb_p = int(avail // per_row)
        tb_p = max(row_mult, (tb_p // row_mult) * row_mult)
        tb_p = min(tb_p, cap_p)
        if gen == "v7x" and B >= 2048:
            # Guarantee >= 2 grid steps so both TensorCores stream HBM.
            tb_p = min(tb_p, _round_up(pl.cdiv(n_rows, 2), row_mult))
    if tb_p >= n_rows:
        tb_p = n_rows            # single step; block == full dim (always legal)

    grid = (pl.cdiv(n_rows, tb_p),)

    w_isz = jnp.dtype(w_dtype).itemsize
    cost = pl.CostEstimate(
        flops=2 * n_rows * (feat_in * feat_hid + feat_hid * feat_out),
        transcendentals=n_rows * (feat_hid + feat_out),
        bytes_accessed=(n_rows * (feat_in * jnp.dtype(in_dtype).itemsize
                                  + feat_out * jnp.dtype(out_dtype).itemsize)
                        + (feat_in * feat_hid + feat_hid * feat_out) * w_isz
                        + (feat_hid + feat_out) * 4),
    )

    def run(dim_semantics):
        grid_spec = pl.GridSpec(
            grid=grid,
            in_specs=[
                pl.BlockSpec((tb_p, feat_in), lambda i: (i, 0)),       # streamed y
                pl.BlockSpec((feat_in, feat_hid), lambda i: (0, 0)),   # resident W1
                pl.BlockSpec((1, feat_hid), lambda i: (0, 0)),         # resident b1 (f32)
                pl.BlockSpec((feat_hid, feat_out), lambda i: (0, 0)),  # resident W2
                pl.BlockSpec((1, feat_out), lambda i: (0, 0)),         # resident b2 (f32)
            ],
            out_specs=pl.BlockSpec((tb_p, feat_out), lambda i: (i, 0)),
        )
        return pl.pallas_call(
            enc_kernel,
            out_shape=jax.ShapeDtypeStruct((n_rows, feat_out), out_dtype),
            grid_spec=grid_spec,
            compiler_params=pltpu.CompilerParams(dimension_semantics=dim_semantics),
            cost_estimate=cost,
        )(y_p, w1p, b1p, w2p, b2p)

    if core_parallel is None:
        core_parallel = (gen == "v7x" and grid[0] > 1)
    if core_parallel and hasattr(pltpu, "CORE_PARALLEL"):
        try:
            out = run((pltpu.CORE_PARALLEL,))
        except Exception:
            out = run(("parallel",))   # safe fallback if CORE_PARALLEL rejects
    else:
        out = run(("parallel",))

    out = out.reshape(Bp, d_x)         # free row-major reshape back to (Bp, d_x)
    return out[:B] if Bp != B else out


def enc_reference(y, w1, b1, w2, b2):
    h = jnp.tanh(jnp.dot(y, w1, precision=lax.Precision.HIGHEST) + b1)
    return jax.nn.sigmoid(jnp.dot(h, w2, precision=lax.Precision.HIGHEST) + b2)


if __name__ == "__main__":
    # Small shapes consistent with the module: Enc(d_y=32, d_hid=64, d_x=16)
    B, d_y, d_hid, d_x = 16, 32, 64, 16

    key = jax.random.PRNGKey(0)
    k_y, k_w1, k_b1, k_w2, k_b2, k_big = jax.random.split(key, 6)

    lim1 = 1.0 / (d_y ** 0.5)
    lim2 = 1.0 / (d_hid ** 0.5)
    y = jax.random.normal(k_y, (B, d_y), dtype=jnp.float32)
    w1 = jax.random.uniform(k_w1, (d_y, d_hid), jnp.float32, -lim1, lim1)
    b1 = jax.random.uniform(k_b1, (1, d_hid), jnp.float32, -lim1, lim1)
    w2 = jax.random.uniform(k_w2, (d_hid, d_x), jnp.float32, -lim2, lim2)
    b2 = jax.random.uniform(k_b2, (1, d_x), jnp.float32, -lim2, lim2)

    ref = enc_reference(y, w1, b1, w2, b2)

    # f32 path (tight tolerance), single grid step for this tiny batch.
    out = jax.block_until_ready(enc_forward(y, w1, b1, w2, b2, use_bf16_matmul=False))
    assert out.shape == (B, d_x)
    assert jnp.allclose(out, ref, atol=1e-5, rtol=1e-5), "mismatch vs reference (f32)"

    # Ragged batch (B not a multiple of the pack factor).
    out_odd = jax.block_until_ready(
        enc_forward(y[:13], w1, b1, w2, b2, use_bf16_matmul=False))
    assert out_odd.shape == (13, d_x)
    assert jnp.allclose(out_odd, ref[:13], atol=1e-5, rtol=1e-5), "mismatch (ragged)"

    # Multi-step cdiv grid with a partial trailing block (no wrapper tile-pad).
    Bb = 1000
    y_big = jax.random.normal(k_big, (Bb, d_y), dtype=jnp.float32)
    ref_big = enc_reference(y_big, w1, b1, w2, b2)
    out_big = jax.block_until_ready(
        enc_forward(y_big, w1, b1, w2, b2, use_bf16_matmul=False, block_rows=256))
    assert out_big.shape == (Bb, d_x)
    assert jnp.allclose(out_big, ref_big, atol=1e-5, rtol=1e-5), "mismatch (multi-step)"

    # Default path: bf16 streaming on v6e/v7x (f32 accum + epilogue), f32 on v5.
    out_def = jax.block_until_ready(enc_forward(y, w1, b1, w2, b2))
    assert out_def.shape == (B, d_x)
    assert jnp.allclose(out_def, ref, atol=5e-2, rtol=5e-2), "mismatch (default path)"

    print("KERNEL_OK")
</pallas_src>

<mosaic_0001>
module attributes {stable_mosaic.version = 11 : i64} {
  func.func @enc_kernel(%arg0: i32, %arg1: memref<4x128xf32, #tpu.memory_space<vmem>>, %arg2: memref<128x256xf32, #tpu.memory_space<vmem>>, %arg3: memref<1x256xf32, #tpu.memory_space<vmem>>, %arg4: memref<256x64xf32, #tpu.memory_space<vmem>>, %arg5: memref<1x64xf32, #tpu.memory_space<vmem>>, %arg6: memref<4x64xf32, #tpu.memory_space<vmem>>) attributes {dimension_semantics = [#tpu.dimension_semantics<parallel>], iteration_bounds = array<i64: 1>, scalar_prefetch = 0 : i64, scratch_operands = 0 : i64, tpu.core_type = #tpu.core_type<tc>, window_params = [{transform_indices = @transform_0, window_bounds = array<i64: 4, 128>}, {pipeline_mode = #tpu.pipeline_mode<synchronous>, transform_indices = @transform_1, window_bounds = array<i64: 128, 256>}, {pipeline_mode = #tpu.pipeline_mode<synchronous>, transform_indices = @transform_2, window_bounds = array<i64: 1, 256>}, {pipeline_mode = #tpu.pipeline_mode<synchronous>, transform_indices = @transform_3, window_bounds = array<i64: 256, 64>}, {pipeline_mode = #tpu.pipeline_mode<synchronous>, transform_indices = @transform_4, window_bounds = array<i64: 1, 64>}, {transform_indices = @transform_5, window_bounds = array<i64: 4, 64>}]} {
    %c0 = arith.constant 0 : index
    %c0_0 = arith.constant 0 : index
    %0 = vector.load %arg1[%c0, %c0_0] : memref<4x128xf32, #tpu.memory_space<vmem>>, vector<4x128xf32>
    %c0_1 = arith.constant 0 : index
    %c0_2 = arith.constant 0 : index
    %1 = vector.load %arg2[%c0_1, %c0_2] : memref<128x256xf32, #tpu.memory_space<vmem>>, vector<128x256xf32>
    %cst = arith.constant dense<0.000000e+00> : vector<4x256xf32>
    %2 = tpu.matmul %0, %1, %cst {dimension_numbers = #tpu.dot_dimension_numbers<[1], [0], [0], [1], [0, 0, 1, 1], [], []>, precision = #tpu.contract_precision<fp32>} : vector<4x128xf32>, vector<128x256xf32>, vector<4x256xf32> -> vector<4x256xf32>
    %c0_3 = arith.constant 0 : index
    %c0_4 = arith.constant 0 : index
    %3 = vector.load %arg3[%c0_3, %c0_4] : memref<1x256xf32, #tpu.memory_space<vmem>>, vector<1x256xf32>
    %4 = vector.broadcast %3 : vector<1x256xf32> to vector<4x256xf32>
    %5 = arith.addf %2, %4 : vector<4x256xf32>
    %6 = math.tanh %5 : vector<4x256xf32>
    %c0_5 = arith.constant 0 : index
    %c0_6 = arith.constant 0 : index
    %7 = vector.load %arg4[%c0_5, %c0_6] : memref<256x64xf32, #tpu.memory_space<vmem>>, vector<256x64xf32>
    %cst_7 = arith.constant dense<0.000000e+00> : vector<4x64xf32>
    %8 = tpu.matmul %6, %7, %cst_7 {dimension_numbers = #tpu.dot_dimension_numbers<[1], [0], [0], [1], [0, 0, 1, 1], [], []>, precision = #tpu.contract_precision<fp32>} : vector<4x256xf32>, vector<256x64xf32>, vector<4x64xf32> -> vector<4x64xf32>
    %c0_8 = arith.constant 0 : index
    %c0_9 = arith.constant 0 : index
    %9 = vector.load %arg5[%c0_8, %c0_9] : memref<1x64xf32, #tpu.memory_space<vmem>>, vector<1x64xf32>
    %10 = vector.broadcast %9 : vector<1x64xf32> to vector<4x64xf32>
    %11 = arith.addf %8, %10 : vector<4x64xf32>
    %cst_10 = arith.constant 5.000000e-01 : f32
    %12 = vector.broadcast %cst_10 : f32 to vector<4x64xf32>
    %13 = arith.mulf %12, %11 : vector<4x64xf32>
    %14 = math.tanh %13 : vector<4x64xf32>
    %cst_11 = arith.constant 5.000000e-01 : f32
    %15 = vector.broadcast %cst_11 : f32 to vector<4x64xf32>
    %16 = arith.mulf %15, %14 : vector<4x64xf32>
    %cst_12 = arith.constant 5.000000e-01 : f32
    %17 = vector.broadcast %cst_12 : f32 to vector<4x64xf32>
    %18 = arith.addf %16, %17 : vector<4x64xf32>
    %c0_13 = arith.constant 0 : index
    %c0_14 = arith.constant 0 : index
    %19 = vector.load %arg6[%c0_13, %c0_14] : memref<4x64xf32, #tpu.memory_space<vmem>>, vector<4x64xf32>
    tpu.vector_store %arg6[%c0_13, %c0_14], %18 {strides = array<i32>} : memref<4x64xf32, #tpu.memory_space<vmem>>, vector<4x64xf32>,
    return
  }
  func.func @transform_0(%arg0: i32) -> (i32, i32) {
    %c0_i32 = arith.constant 0 : i32
    %c0_i32_0 = arith.constant 0 : i32
    return %arg0, %c0_i32 : i32, i32
  }
  func.func @transform_1(%arg0: i32) -> (i32, i32) {
    %c0_i32 = arith.constant 0 : i32
    %c0_i32_0 = arith.constant 0 : i32
    %c0_i32_1 = arith.constant 0 : i32
    return %c0_i32, %c0_i32_0 : i32, i32
  }
  func.func @transform_2(%arg0: i32) -> (i32, i32) {
    %c0_i32 = arith.constant 0 : i32
    %c0_i32_0 = arith.constant 0 : i32
    %c0_i32_1 = arith.constant 0 : i32
    return %c0_i32, %c0_i32_0 : i32, i32
  }
  func.func @transform_3(%arg0: i32) -> (i32, i32) {
    %c0_i32 = arith.constant 0 : i32
    %c0_i32_0 = arith.constant 0 : i32
    %c0_i32_1 = arith.constant 0 : i32
    return %c0_i32, %c0_i32_0 : i32, i32
  }
  func.func @transform_4(%arg0: i32) -> (i32, i32) {
    %c0_i32 = arith.constant 0 : i32
    %c0_i32_0 = arith.constant 0 : i32
    %c0_i32_1 = arith.constant 0 : i32
    return %c0_i32, %c0_i32_0 : i32, i32
  }
  func.func @transform_5(%arg0: i32) -> (i32, i32) {
    %c0_i32 = arith.constant 0 : i32
    %c0_i32_0 = arith.constant 0 : i32
    return %arg0, %c0_i32 : i32, i32
  }
}

</mosaic_0001>

<llo_original>
// kernel: tpu_custom_call.1
$region0: #{tpu_custom_call.1}
  #allocation0 [shape = 'u32[]', space=smem, size = 0x4, offset = 0x4, fixed_abs, tag = 'smem constant byte address 0x4 - core index']
  #allocation1 [shape = 'u32[144,128]{1,0:T(1,128)}', space=vmem, size = 0x12000, scoped, tag = 'internal scratch']
  %s0 = inlined_call_operand.vmem [shape: f32[4,128], index: 0, kind: input, shape index: {}]
  %s1 = inlined_call_operand.vmem [shape: f32[128,256], index: 1, kind: input, shape index: {}]
  %s2 = inlined_call_operand.vmem [shape: f32[1,256], index: 2, kind: input, shape index: {}]
  %s3 = inlined_call_operand.vmem [shape: f32[256,64], index: 3, kind: input, shape index: {}]
  %s4 = inlined_call_operand.vmem [shape: f32[1,64], index: 4, kind: input, shape index: {}]
  %s5 = inlined_call_operand.hbm [shape: f32[4,64], index: 5, kind: output, shape index: {}]
  %s6 = sld [smem:[#allocation0]]
  $region30: #{tpu_custom_call.1} parent=0
    _
  %s8 = ssub.s32 1, %s6
  %s9 = scalar_select 0, %s8, %s6
  $region1: #{tpu_custom_call.1} parent=0
    #allocation2 [shape = 'u8[2048]{0}', space=vmem, size = 0x800, scoped, tag = 'output window, operand 0, single buffered']
    #allocation3 [shape = 's32[1]{0}', space=sflag, size = 0x4, scoped, tag = 'scoped memory for tpu_custom_call.1']
    %10 = vsyncpa [#allocation3], 0
    // Predicated region
    $region2: #{tpu_custom_call.1} parent=1 // pred_check
      _
    $region3: #{tpu_custom_call.1} parent=1 // pred_check_branch
      %12 = sbr.rel (0) target = $region5
    $region4: #{tpu_custom_call.1} parent=1 // pred_region
      _
    $region5: #{tpu_custom_call.1} parent=1 // pred_fallthru
      _
    // Predicated region
    $region6: #{tpu_custom_call.1} parent=1 // pred_check
      _
    $region7: #{tpu_custom_call.1} parent=1 // pred_check_branch
      %14 = sbr.rel (0) target = $region9
    $region8: #{tpu_custom_call.1} parent=1 // pred_region
      _
    $region9: #{tpu_custom_call.1} parent=1 // pred_fallthru
      _
    // Predicated region
    $region10: #{tpu_custom_call.1} parent=1 // pred_check
      _
    $region11: #{tpu_custom_call.1} parent=1 // pred_check_branch
      %16 = sbr.rel (0) target = $region13
    $region12: #{tpu_custom_call.1} parent=1 // pred_region
      _
    $region13: #{tpu_custom_call.1} parent=1 // pred_fallthru
      _
    // Predicated region
    $region14: #{tpu_custom_call.1} parent=1 // pred_check
      _
    $region15: #{tpu_custom_call.1} parent=1 // pred_check_branch
      %18 = sbr.rel (0) target = $region17
    $region16: #{tpu_custom_call.1} parent=1 // pred_region
      _
    $region17: #{tpu_custom_call.1} parent=1 // pred_fallthru
      _
    // Predicated region
    $region18: #{tpu_custom_call.1} parent=1 // pred_check
      _
    $region19: #{tpu_custom_call.1} parent=1 // pred_check_branch
      %20 = sbr.rel (0) target = $region21
    $region20: #{tpu_custom_call.1} parent=1 // pred_region
      _
    $region21: #{tpu_custom_call.1} parent=1 // pred_fallthru
      _
    %v21 = vld [vmem:[%s0] sm:$0xf]
    %v22 = vld [vmem:[%s1] sm:$0xff]
    %v23 = vld [vmem:[%s1 + $0x8] sm:$0xff]
    %v24 = vld [vmem:[%s1 + $0x10] sm:$0xff]
    %v25 = vld [vmem:[%s1 + $0x18] sm:$0xff]
    %v26 = vld [vmem:[%s1 + $0x20] sm:$0xff]
    %v27 = vld [vmem:[%s1 + $0x28] sm:$0xff]
    %v28 = vld [vmem:[%s1 + $0x30] sm:$0xff]
    %v29 = vld [vmem:[%s1 + $0x38] sm:$0xff]
    %v30 = vld [vmem:[%s1 + $0x40] sm:$0xff]
    %v31 = vld [vmem:[%s1 + $0x48] sm:$0xff]
    %v32 = vld [vmem:[%s1 + $0x50] sm:$0xff]
    %v33 = vld [vmem:[%s1 + $0x58] sm:$0xff]
    %v34 = vld [vmem:[%s1 + $0x60] sm:$0xff]
    %v35 = vld [vmem:[%s1 + $0x68] sm:$0xff]
    %v36 = vld [vmem:[%s1 + $0x70] sm:$0xff]
    %v37 = vld [vmem:[%s1 + $0x78] sm:$0xff]
    %v38 = vld [vmem:[%s1 + $0x80] sm:$0xff]
    %v39 = vld [vmem:[%s1 + $0x88] sm:$0xff]
    %v40 = vld [vmem:[%s1 + $0x90] sm:$0xff]
    %v41 = vld [vmem:[%s1 + $0x98] sm:$0xff]
    %v42 = vld [vmem:[%s1 + $0xa0] sm:$0xff]
    %v43 = vld [vmem:[%s1 + $0xa8] sm:$0xff]
    %v44 = vld [vmem:[%s1 + $0xb0] sm:$0xff]
    %v45 = vld [vmem:[%s1 + $0xb8] sm:$0xff]
    %v46 = vld [vmem:[%s1 + $0xc0] sm:$0xff]
    %v47 = vld [vmem:[%s1 + $0xc8] sm:$0xff]
    %v48 = vld [vmem:[%s1 + $0xd0] sm:$0xff]
    %v49 = vld [vmem:[%s1 + $0xd8] sm:$0xff]
    %v50 = vld [vmem:[%s1 + $0xe0] sm:$0xff]
    %v51 = vld [vmem:[%s1 + $0xe8] sm:$0xff]
    %v52 = vld [vmem:[%s1 + $0xf0] sm:$0xff]
    %v53 = vld [vmem:[%s1 + $0xf8] sm:$0xff]
    %v54 = vld [vmem:[%s2] sm:$0x3]
    %v56 = vlaneseq
    %v57 = vshrl.u32 %v56, 7
    %v58 = vsub.s32 0, %v57
    %v59 = vrot.slane %v54, %v58
    %v60 = vlaneseq
    %v61 = vshrl.u32 %v60, 7
    %v62 = vsub.s32 1, %v61
    %v63 = vrot.slane %v54, %v62
    %v66 = vand.u32 %v53, 4294901760
    %67 = vmatprep.subr.mxu0 %v66
    %v68 = vand.u32 %v52, 4294901760
    %69 = vmatpush1.msra.mxu0 %v68
    %v70 = vand.u32 %v51, 4294901760
    %71 = vmatprep.subr.mxu0 %v70
    %v72 = vand.u32 %v50, 4294901760
    %73 = vmatpush1.msra.mxu0 %v72
    %v74 = vand.u32 %v49, 4294901760
    %75 = vmatprep.subr.mxu0 %v74
    %v76 = vand.u32 %v48, 4294901760
    %77 = vmatpush1.msra.mxu0 %v76
    %v78 = vand.u32 %v47, 4294901760
    %79 = vmatprep.subr.mxu0 %v78
    %v80 = vand.u32 %v46, 4294901760
    %81 = vmatpush1.msra.mxu0 %v80
    %v82 = vand.u32 %v45, 4294901760
    %83 = vmatprep.subr.mxu0 %v82
    %v84 = vand.u32 %v44, 4294901760
    %85 = vmatpush1.msra.mxu0 %v84
    %v86 = vand.u32 %v43, 4294901760
    %87 = vmatprep.subr.mxu0 %v86
    %v88 = vand.u32 %v42, 4294901760
    %89 = vmatpush1.msra.mxu0 %v88
    %v90 = vand.u32 %v41, 4294901760
    %91 = vmatprep.subr.mxu0 %v90
    %v92 = vand.u32 %v40, 4294901760
    %93 = vmatpush1.msra.mxu0 %v92
    %v94 = vand.u32 %v39, 4294901760
    %95 = vmatprep.subr.mxu0 %v94
    %v96 = vand.u32 %v38, 4294901760
    %97 = vmatpush1.msra.mxu0 %v96
    %v98 = vand.u32 %v37, 4294901760
    %99 = vmatprep.subr.mxu0 %v98
    %v100 = vand.u32 %v36, 4294901760
    %101 = vmatpush1.msra.mxu0 %v100
    %v102 = vand.u32 %v35, 4294901760
    %103 = vmatprep.subr.mxu0 %v102
    %v104 = vand.u32 %v34, 4294901760
    %105 = vmatpush1.msra.mxu0 %v104
    %v106 = vand.u32 %v33, 4294901760
    %107 = vmatprep.subr.mxu0 %v106
    %v108 = vand.u32 %v32, 4294901760
    %109 = vmatpush1.msra.mxu0 %v108
    %v110 = vand.u32 %v31, 4294901760
    %111 = vmatprep.subr.mxu0 %v110
    %v112 = vand.u32 %v30, 4294901760
    %113 = vmatpush1.msra.mxu0 %v112
    %v114 = vand.u32 %v29, 4294901760
    %115 = vmatprep.subr.mxu0 %v114
    %v116 = vand.u32 %v28, 4294901760
    %117 = vmatpush1.msra.mxu0 %v116
    %v118 = vand.u32 %v27, 4294901760
    %119 = vmatprep.subr.mxu0 %v118
    %v120 = vand.u32 %v26, 4294901760
    %121 = vmatpush1.msra.mxu0 %v120
    %v122 = vand.u32 %v25, 4294901760
    %123 = vmatprep.subr.mxu0 %v122
    %v124 = vand.u32 %v24, 4294901760
    %125 = vmatpush1.msra.mxu0 %v124
    %v126 = vand.u32 %v23, 4294901760
    %127 = vmatprep.subr.mxu0 %v126
    %v128 = vand.u32 %v22, 4294901760
    %129 = vmatpush1.msra.mxu0 %v128
    %130 = vmatprep.subr.mxu0 0.0
    %131 = vmatpush2.msra.mxu0 0.0
    %132 = vmatprep.subr.mxu0 0.0
    %133 = vmatpush2.msra.mxu0 0.0
    %134 = vmatprep.subr.mxu0 0.0
    %135 = vmatpush2.msra.mxu0 0.0
    %136 = vmatprep.subr.mxu0 0.0
    %137 = vmatpush2.msra.mxu0 0.0
    %138 = vmatprep.subr.mxu0 0.0
    %139 = vmatpush2.msra.mxu0 0.0
    %140 = vmatprep.subr.mxu0 0.0
    %141 = vmatpush2.msra.mxu0 0.0
    %142 = vmatprep.subr.mxu0 0.0
    %143 = vmatpush2.msra.mxu0 0.0
    %144 = vmatprep.subr.mxu0 0.0
    %145 = vmatpush2.msra.mxu0 0.0
    %146 = vmatprep.subr.mxu0 0.0
    %147 = vmatpush2.msra.mxu0 0.0
    %148 = vmatprep.subr.mxu0 0.0
    %149 = vmatpush2.msra.mxu0 0.0
    %150 = vmatprep.subr.mxu0 0.0
    %151 = vmatpush2.msra.mxu0 0.0
    %152 = vmatprep.subr.mxu0 0.0
    %153 = vmatpush2.msra.mxu0 0.0
    %154 = vmatprep.subr.mxu0 0.0
    %155 = vmatpush2.msra.mxu0 0.0
    %156 = vmatprep.subr.mxu0 0.0
    %157 = vmatpush2.msra.mxu0 0.0
    %158 = vmatprep.subr.mxu0 0.0
    %159 = vmatpush2.msra.mxu0 0.0
    %160 = vmatprep.subr.mxu0 0.0
    %161 = vmatpush2.msra.mxu0 0.0
    %162 = vmatprep.mubr.f32.mxu0 0.0
    %v163 = vand.u32 %v21, 4294901760
    %v164 = vsub.f32 %v21, %v163
    %v165 = vand.u32 %v164, 4294901760
    %v166 = vsub.f32 %v164, %v165
    %v167 = vand.u32 %v166, 4294901760
    %168 = vmatmul.mubr.f32.gmra.mxu0 %v167
    %v169 = vpop.f32.mrf.mxu0
    %v170 = vadd.f32 %v59, %v169
    %v171 = vpop.f32.mrf.mxu0
    %v172 = vadd.f32 %v63, %v171
    %173 = vdwg.mxu0
    %v174 = vand.u32 %v53, 4294901760
    %v175 = vsub.f32 %v53, %v174
    %v176 = vand.u32 %v175, 4294901760
    %v177 = vsub.f32 %v175, %v176
    %v178 = vand.u32 %v177, 4294901760
    %179 = vmatprep.subr.mxu0 %v178
    %v180 = vand.u32 %v52, 4294901760
    %v181 = vsub.f32 %v52, %v180
    %v182 = vand.u32 %v181, 4294901760
    %v183 = vsub.f32 %v181, %v182
    %v184 = vand.u32 %v183, 4294901760
    %185 = vmatpush1.msra.mxu0 %v184
    %v186 = vand.u32 %v51, 4294901760
    %v187 = vsub.f32 %v51, %v186
    %v188 = vand.u32 %v187, 4294901760
    %v189 = vsub.f32 %v187, %v188
    %v190 = vand.u32 %v189, 4294901760
    %191 = vmatprep.subr.mxu0 %v190
    %v192 = vand.u32 %v50, 4294901760
    %v193 = vsub.f32 %v50, %v192
    %v194 = vand.u32 %v193, 4294901760
    %v195 = vsub.f32 %v193, %v194
    %v196 = vand.u32 %v195, 4294901760
    %197 = vmatpush1.msra.mxu0 %v196
    %v198 = vand.u32 %v49, 4294901760
    %v199 = vsub.f32 %v49, %v198
    %v200 = vand.u32 %v199, 4294901760
    %v201 = vsub.f32 %v199, %v200
    %v202 = vand.u32 %v201, 4294901760
    %203 = vmatprep.subr.mxu0 %v202
    %v204 = vand.u32 %v48, 4294901760
    %v205 = vsub.f32 %v48, %v204
    %v206 = vand.u32 %v205, 4294901760
    %v207 = vsub.f32 %v205, %v206
    %v208 = vand.u32 %v207, 4294901760
    %209 = vmatpush1.msra.mxu0 %v208
    %v210 = vand.u32 %v47, 4294901760
    %v211 = vsub.f32 %v47, %v210
    %v212 = vand.u32 %v211, 4294901760
    %v213 = vsub.f32 %v211, %v212
    %v214 = vand.u32 %v213, 4294901760
    %215 = vmatprep.subr.mxu0 %v214
    %v216 = vand.u32 %v46, 4294901760
    %v217 = vsub.f32 %v46, %v216
    %v218 = vand.u32 %v217, 4294901760
    %v219 = vsub.f32 %v217, %v218
    %v220 = vand.u32 %v219, 4294901760
    %221 = vmatpush1.msra.mxu0 %v220
    %v222 = vand.u32 %v45, 4294901760
    %v223 = vsub.f32 %v45, %v222
    %v224 = vand.u32 %v223, 4294901760
    %v225 = vsub.f32 %v223, %v224
    %v226 = vand.u32 %v225, 4294901760
    %227 = vmatprep.subr.mxu0 %v226
    %v228 = vand.u32 %v44, 4294901760
    %v229 = vsub.f32 %v44, %v228
    %v230 = vand.u32 %v229, 4294901760
    %v231 = vsub.f32 %v229, %v230
    %v232 = vand.u32 %v231, 4294901760
    %233 = vmatpush1.msra.mxu0 %v232
    %v234 = vand.u32 %v43, 4294901760
    %v235 = vsub.f32 %v43, %v234
    %v236 = vand.u32 %v235, 4294901760
    %v237 = vsub.f32 %v235, %v236
    %v238 = vand.u32 %v237, 4294901760
    %239 = vmatprep.subr.mxu0 %v238
    %v240 = vand.u32 %v42, 4294901760
    %v241 = vsub.f32 %v42, %v240
    %v242 = vand.u32 %v241, 4294901760
    %v243 = vsub.f32 %v241, %v242
    %v244 = vand.u32 %v243, 4294901760
    %245 = vmatpush1.msra.mxu0 %v244
    %v246 = vand.u32 %v41, 4294901760
    %v247 = vsub.f32 %v41, %v246
    %v248 = vand.u32 %v247, 4294901760
    %v249 = vsub.f32 %v247, %v248
    %v250 = vand.u32 %v249, 4294901760
    %251 = vmatprep.subr.mxu0 %v250
    %v252 = vand.u32 %v40, 4294901760
    %v253 = vsub.f32 %v40, %v252
    %v254 = vand.u32 %v253, 4294901760
    %v255 = vsub.f32 %v253, %v254
    %v256 = vand.u32 %v255, 4294901760
    %257 = vmatpush1.msra.mxu0 %v256
    %v258 = vand.u32 %v39, 4294901760
    %v259 = vsub.f32 %v39, %v258
    %v260 = vand.u32 %v259, 4294901760
    %v261 = vsub.f32 %v259, %v260
    %v262 = vand.u32 %v261, 4294901760
    %263 = vmatprep.subr.mxu0 %v262
    %v264 = vand.u32 %v38, 4294901760
    %v265 = vsub.f32 %v38, %v264
    %v266 = vand.u32 %v265, 4294901760
    %v267 = vsub.f32 %v265, %v266
    %v268 = vand.u32 %v267, 4294901760
    %269 = vmatpush1.msra.mxu0 %v268
    %v270 = vand.u32 %v37, 4294901760
    %v271 = vsub.f32 %v37, %v270
    %v272 = vand.u32 %v271, 4294901760
    %v273 = vsub.f32 %v271, %v272
    %v274 = vand.u32 %v273, 4294901760
    %275 = vmatprep.subr.mxu0 %v274
    %v276 = vand.u32 %v36, 4294901760
    %v277 = vsub.f32 %v36, %v276
    %v278 = vand.u32 %v277, 4294901760
    %v279 = vsub.f32 %v277, %v278
    %v280 = vand.u32 %v279, 4294901760
    %281 = vmatpush1.msra.mxu0 %v280
    %v282 = vand.u32 %v35, 4294901760
    %v283 = vsub.f32 %v35, %v282
    %v284 = vand.u32 %v283, 4294901760
    %v285 = vsub.f32 %v283, %v284
    %v286 = vand.u32 %v285, 4294901760
    %287 = vmatprep.subr.mxu0 %v286
    %v288 = vand.u32 %v34, 4294901760
    %v289 = vsub.f32 %v34, %v288
    %v290 = vand.u32 %v289, 4294901760
    %v291 = vsub.f32 %v289, %v290
    %v292 = vand.u32 %v291, 4294901760
    %293 = vmatpush1.msra.mxu0 %v292
    %v294 = vand.u32 %v33, 4294901760
    %v295 = vsub.f32 %v33, %v294
    %v296 = vand.u32 %v295, 4294901760
    %v297 = vsub.f32 %v295, %v296
    %v298 = vand.u32 %v297, 4294901760
    %299 = vmatprep.subr.mxu0 %v298
    %v300 = vand.u32 %v32, 4294901760
    %v301 = vsub.f32 %v32, %v300
    %v302 = vand.u32 %v301, 4294901760
    %v303 = vsub.f32 %v301, %v302
    %v304 = vand.u32 %v303, 4294901760
    %305 = vmatpush1.msra.mxu0 %v304
    %v306 = vand.u32 %v31, 4294901760
    %v307 = vsub.f32 %v31, %v306
    %v308 = vand.u32 %v307, 4294901760
    %v309 = vsub.f32 %v307, %v308
    %v310 = vand.u32 %v309, 4294901760
    %311 = vmatprep.subr.mxu0 %v310
    %v312 = vand.u32 %v30, 4294901760
    %v313 = vsub.f32 %v30, %v312
    %v314 = vand.u32 %v313, 4294901760
    %v315 = vsub.f32 %v313, %v314
    %v316 = vand.u32 %v315, 4294901760
    %317 = vmatpush1.msra.mxu0 %v316
    %v318 = vand.u32 %v29, 4294901760
    %v319 = vsub.f32 %v29, %v318
    %v320 = vand.u32 %v319, 4294901760
    %v321 = vsub.f32 %v319, %v320
    %v322 = vand.u32 %v321, 4294901760
    %323 = vmatprep.subr.mxu0 %v322
    %v324 = vand.u32 %v28, 4294901760
    %v325 = vsub.f32 %v28, %v324
    %v326 = vand.u32 %v325, 4294901760
    %v327 = vsub.f32 %v325, %v326
    %v328 = vand.u32 %v327, 4294901760
    %329 = vmatpush1.msra.mxu0 %v328
    %v330 = vand.u32 %v27, 4294901760
    %v331 = vsub.f32 %v27, %v330
    %v332 = vand.u32 %v331, 4294901760
    %v333 = vsub.f32 %v331, %v332
    %v334 = vand.u32 %v333, 4294901760
    %335 = vmatprep.subr.mxu0 %v334
    %v336 = vand.u32 %v26, 4294901760
    %v337 = vsub.f32 %v26, %v336
    %v338 = vand.u32 %v337, 4294901760
    %v339 = vsub.f32 %v337, %v338
    %v340 = vand.u32 %v339, 4294901760
    %341 = vmatpush1.msra.mxu0 %v340
    %v342 = vand.u32 %v25, 4294901760
    %v343 = vsub.f32 %v25, %v342
    %v344 = vand.u32 %v343, 4294901760
    %v345 = vsub.f32 %v343, %v344
    %v346 = vand.u32 %v345, 4294901760
    %347 = vmatprep.subr.mxu0 %v346
    %v348 = vand.u32 %v24, 4294901760
    %v349 = vsub.f32 %v24, %v348
    %v350 = vand.u32 %v349, 4294901760
    %v351 = vsub.f32 %v349, %v350
    %v352 = vand.u32 %v351, 4294901760
    %353 = vmatpush1.msra.mxu0 %v352
    %v354 = vand.u32 %v23, 4294901760
    %v355 = vsub.f32 %v23, %v354
    %v356 = vand.u32 %v355, 4294901760
    %v357 = vsub.f32 %v355, %v356
    %v358 = vand.u32 %v357, 4294901760
    %359 = vmatprep.subr.mxu0 %v358
    %v360 = vand.u32 %v22, 4294901760
    %v361 = vsub.f32 %v22, %v360
    %v362 = vand.u32 %v361, 4294901760
    %v363 = vsub.f32 %v361, %v362
    %v364 = vand.u32 %v363, 4294901760
    %365 = vmatpush1.msra.mxu0 %v364
    %366 = vmatprep.subr.mxu0 0.0
    %367 = vmatpush2.msra.mxu0 0.0
    %368 = vmatprep.subr.mxu0 0.0
    %369 = vmatpush2.msra.mxu0 0.0
    %370 = vmatprep.subr.mxu0 0.0
    %371 = vmatpush2.msra.mxu0 0.0
    %372 = vmatprep.subr.mxu0 0.0
    %373 = vmatpush2.msra.mxu0 0.0
    %374 = vmatprep.subr.mxu0 0.0
    %375 = vmatpush2.msra.mxu0 0.0
    %376 = vmatprep.subr.mxu0 0.0
    %377 = vmatpush2.msra.mxu0 0.0
    %378 = vmatprep.subr.mxu0 0.0
    %379 = vmatpush2.msra.mxu0 0.0
    %380 = vmatprep.subr.mxu0 0.0
    %381 = vmatpush2.msra.mxu0 0.0
    %382 = vmatprep.subr.mxu0 0.0
    %383 = vmatpush2.msra.mxu0 0.0
    %384 = vmatprep.subr.mxu0 0.0
    %385 = vmatpush2.msra.mxu0 0.0
    %386 = vmatprep.subr.mxu0 0.0
    %387 = vmatpush2.msra.mxu0 0.0
    %388 = vmatprep.subr.mxu0 0.0
    %389 = vmatpush2.msra.mxu0 0.0
    %390 = vmatprep.subr.mxu0 0.0
    %391 = vmatpush2.msra.mxu0 0.0
    %392 = vmatprep.subr.mxu0 0.0
    %393 = vmatpush2.msra.mxu0 0.0
    %394 = vmatprep.subr.mxu0 0.0
    %395 = vmatpush2.msra.mxu0 0.0
    %396 = vmatprep.subr.mxu0 0.0
    %397 = vmatpush2.msra.mxu0 0.0
    %398 = vmatprep.mubr.f32.mxu0 0.0
    %v399 = vand.u32 %v21, 4294901760
    %400 = vmatmul.mubr.f32.gmra.mxu0 %v399
    %v401 = vpop.f32.mrf.mxu0
    %v402 = vadd.f32 %v170, %v401
    %v403 = vpop.f32.mrf.mxu0
    %v404 = vadd.f32 %v172, %v403
    %405 = vdwg.mxu0
    %v406 = vand.u32 %v53, 4294901760
    %v407 = vsub.f32 %v53, %v406
    %408 = vmatprep.subr.mxu0 %v407
    %v409 = vand.u32 %v52, 4294901760
    %v410 = vsub.f32 %v52, %v409
    %411 = vmatpush1.msra.mxu0 %v410
    %v412 = vand.u32 %v51, 4294901760
    %v413 = vsub.f32 %v51, %v412
    %414 = vmatprep.subr.mxu0 %v413
    %v415 = vand.u32 %v50, 4294901760
    %v416 = vsub.f32 %v50, %v415
    %417 = vmatpush1.msra.mxu0 %v416
    %v418 = vand.u32 %v49, 4294901760
    %v419 = vsub.f32 %v49, %v418
    %420 = vmatprep.subr.mxu0 %v419
    %v421 = vand.u32 %v48, 4294901760
    %v422 = vsub.f32 %v48, %v421
    %423 = vmatpush1.msra.mxu0 %v422
    %v424 = vand.u32 %v47, 4294901760
    %v425 = vsub.f32 %v47, %v424
    %426 = vmatprep.subr.mxu0 %v425
    %v427 = vand.u32 %v46, 4294901760
    %v428 = vsub.f32 %v46, %v427
    %429 = vmatpush1.msra.mxu0 %v428
    %v430 = vand.u32 %v45, 4294901760
    %v431 = vsub.f32 %v45, %v430
    %432 = vmatprep.subr.mxu0 %v431
    %v433 = vand.u32 %v44, 4294901760
    %v434 = vsub.f32 %v44, %v433
    %435 = vmatpush1.msra.mxu0 %v434
    %v436 = vand.u32 %v43, 4294901760
    %v437 = vsub.f32 %v43, %v436
    %438 = vmatprep.subr.mxu0 %v437
    %v439 = vand.u32 %v42, 4294901760
    %v440 = vsub.f32 %v42, %v439
    %441 = vmatpush1.msra.mxu0 %v440
    %v442 = vand.u32 %v41, 4294901760
    %v443 = vsub.f32 %v41, %v442
    %444 = vmatprep.subr.mxu0 %v443
    %v445 = vand.u32 %v40, 4294901760
    %v446 = vsub.f32 %v40, %v445
    %447 = vmatpush1.msra.mxu0 %v446
    %v448 = vand.u32 %v39, 4294901760
    %v449 = vsub.f32 %v39, %v448
    %450 = vmatprep.subr.mxu0 %v449
    %v451 = vand.u32 %v38, 4294901760
    %v452 = vsub.f32 %v38, %v451
    %453 = vmatpush1.msra.mxu0 %v452
    %v454 = vand.u32 %v37, 4294901760
    %v455 = vsub.f32 %v37, %v454
    %456 = vmatprep.subr.mxu0 %v455
    %v457 = vand.u32 %v36, 4294901760
    %v458 = vsub.f32 %v36, %v457
    %459 = vmatpush1.msra.mxu0 %v458
    %v460 = vand.u32 %v35, 4294901760
    %v461 = vsub.f32 %v35, %v460
    %462 = vmatprep.subr.mxu0 %v461
    %v463 = vand.u32 %v34, 4294901760
    %v464 = vsub.f32 %v34, %v463
    %465 = vmatpush1.msra.mxu0 %v464
    %v466 = vand.u32 %v33, 4294901760
    %v467 = vsub.f32 %v33, %v466
    %468 = vmatprep.subr.mxu0 %v467
    %v469 = vand.u32 %v32, 4294901760
    %v470 = vsub.f32 %v32, %v469
    %471 = vmatpush1.msra.mxu0 %v470
    %v472 = vand.u32 %v31, 4294901760
    %v473 = vsub.f32 %v31, %v472
    %474 = vmatprep.subr.mxu0 %v473
    %v475 = vand.u32 %v30, 4294901760
    %v476 = vsub.f32 %v30, %v475
    %477 = vmatpush1.msra.mxu0 %v476
    %v478 = vand.u32 %v29, 4294901760
    %v479 = vsub.f32 %v29, %v478
    %480 = vmatprep.subr.mxu0 %v479
    %v481 = vand.u32 %v28, 4294901760
    %v482 = vsub.f32 %v28, %v481
    %483 = vmatpush1.msra.mxu0 %v482
    %v484 = vand.u32 %v27, 4294901760
    %v485 = vsub.f32 %v27, %v484
    %486 = vmatprep.subr.mxu0 %v485
    %v487 = vand.u32 %v26, 4294901760
    %v488 = vsub.f32 %v26, %v487
    %489 = vmatpush1.msra.mxu0 %v488
    %v490 = vand.u32 %v25, 4294901760
    %v491 = vsub.f32 %v25, %v490
    %492 = vmatprep.subr.mxu0 %v491
    %v493 = vand.u32 %v24, 4294901760
    %v494 = vsub.f32 %v24, %v493
    %495 = vmatpush1.msra.mxu0 %v494
    %v496 = vand.u32 %v23, 4294901760
    %v497 = vsub.f32 %v23, %v496
    %498 = vmatprep.subr.mxu0 %v497
    %v499 = vand.u32 %v22, 4294901760
    %v500 = vsub.f32 %v22, %v499
    %501 = vmatpush1.msra.mxu0 %v500
    %502 = vmatprep.subr.mxu0 0.0
    %503 = vmatpush2.msra.mxu0 0.0
    %504 = vmatprep.subr.mxu0 0.0
    %505 = vmatpush2.msra.mxu0 0.0
    %506 = vmatprep.subr.mxu0 0.0
    %507 = vmatpush2.msra.mxu0 0.0
    %508 = vmatprep.subr.mxu0 0.0
    %509 = vmatpush2.msra.mxu0 0.0
    %510 = vmatprep.subr.mxu0 0.0
    %511 = vmatpush2.msra.mxu0 0.0
    %512 = vmatprep.subr.mxu0 0.0
    %513 = vmatpush2.msra.mxu0 0.0
    %514 = vmatprep.subr.mxu0 0.0
    %515 = vmatpush2.msra.mxu0 0.0
    %516 = vmatprep.subr.mxu0 0.0
    %517 = vmatpush2.msra.mxu0 0.0
    %518 = vmatprep.subr.mxu0 0.0
    %519 = vmatpush2.msra.mxu0 0.0
    %520 = vmatprep.subr.mxu0 0.0
    %521 = vmatpush2.msra.mxu0 0.0
    %522 = vmatprep.subr.mxu0 0.0
    %523 = vmatpush2.msra.mxu0 0.0
    %524 = vmatprep.subr.mxu0 0.0
    %525 = vmatpush2.msra.mxu0 0.0
    %526 = vmatprep.subr.mxu0 0.0
    %527 = vmatpush2.msra.mxu0 0.0
    %528 = vmatprep.subr.mxu0 0.0
    %529 = vmatpush2.msra.mxu0 0.0
    %530 = vmatprep.subr.mxu0 0.0
    %531 = vmatpush2.msra.mxu0 0.0
    %532 = vmatprep.subr.mxu0 0.0
    %533 = vmatpush2.msra.mxu0 0.0
    %534 = vmatprep.mubr.f32.mxu0 0.0
    %v535 = vand.u32 %v21, 4294901760
    %v536 = vsub.f32 %v21, %v535
    %537 = vmatmul.mubr.f32.gmra.mxu0 %v536
    %v538 = vpop.f32.mrf.mxu0
    %v539 = vadd.f32 %v402, %v538
    %v540 = vpop.f32.mrf.mxu0
    %v541 = vadd.f32 %v404, %v540
    %542 = vdwg.mxu0
    %v543 = vand.u32 %v53, 4294901760
    %544 = vmatprep.subr.mxu0 %v543
    %v545 = vand.u32 %v52, 4294901760
    %546 = vmatpush1.msra.mxu0 %v545
    %v547 = vand.u32 %v51, 4294901760
    %548 = vmatprep.subr.mxu0 %v547
    %v549 = vand.u32 %v50, 4294901760
    %550 = vmatpush1.msra.mxu0 %v549
    %v551 = vand.u32 %v49, 4294901760
    %552 = vmatprep.subr.mxu0 %v551
    %v553 = vand.u32 %v48, 4294901760
    %554 = vmatpush1.msra.mxu0 %v553
    %v555 = vand.u32 %v47, 4294901760
    %556 = vmatprep.subr.mxu0 %v555
    %v557 = vand.u32 %v46, 4294901760
    %558 = vmatpush1.msra.mxu0 %v557
    %v559 = vand.u32 %v45, 4294901760
    %560 = vmatprep.subr.mxu0 %v559
    %v561 = vand.u32 %v44, 4294901760
    %562 = vmatpush1.msra.mxu0 %v561
    %v563 = vand.u32 %v43, 4294901760
    %564 = vmatprep.subr.mxu0 %v563
    %v565 = vand.u32 %v42, 4294901760
    %566 = vmatpush1.msra.mxu0 %v565
    %v567 = vand.u32 %v41, 4294901760
    %568 = vmatprep.subr.mxu0 %v567
    %v569 = vand.u32 %v40, 4294901760
    %570 = vmatpush1.msra.mxu0 %v569
    %v571 = vand.u32 %v39, 4294901760
    %572 = vmatprep.subr.mxu0 %v571
    %v573 = vand.u32 %v38, 4294901760
    %574 = vmatpush1.msra.mxu0 %v573
    %v575 = vand.u32 %v37, 4294901760
    %576 = vmatprep.subr.mxu0 %v575
    %v577 = vand.u32 %v36, 4294901760
    %578 = vmatpush1.msra.mxu0 %v577
    %v579 = vand.u32 %v35, 4294901760
    %580 = vmatprep.subr.mxu0 %v579
    %v581 = vand.u32 %v34, 4294901760
    %582 = vmatpush1.msra.mxu0 %v581
    %v583 = vand.u32 %v33, 4294901760
    %584 = vmatprep.subr.mxu0 %v583
    %v585 = vand.u32 %v32, 4294901760
    %586 = vmatpush1.msra.mxu0 %v585
    %v587 = vand.u32 %v31, 4294901760
    %588 = vmatprep.subr.mxu0 %v587
    %v589 = vand.u32 %v30, 4294901760
    %590 = vmatpush1.msra.mxu0 %v589
    %v591 = vand.u32 %v29, 4294901760
    %592 = vmatprep.subr.mxu0 %v591
    %v593 = vand.u32 %v28, 4294901760
    %594 = vmatpush1.msra.mxu0 %v593
    %v595 = vand.u32 %v27, 4294901760
    %596 = vmatprep.subr.mxu0 %v595
    %v597 = vand.u32 %v26, 4294901760
    %598 = vmatpush1.msra.mxu0 %v597
    %v599 = vand.u32 %v25, 4294901760
    %600 = vmatprep.subr.mxu0 %v599
    %v601 = vand.u32 %v24, 4294901760
    %602 = vmatpush1.msra.mxu0 %v601
    %v603 = vand.u32 %v23, 4294901760
    %604 = vmatprep.subr.mxu0 %v603
    %v605 = vand.u32 %v22, 4294901760
    %606 = vmatpush1.msra.mxu0 %v605
    %607 = vmatprep.subr.mxu0 0.0
    %608 = vmatpush2.msra.mxu0 0.0
    %609 = vmatprep.subr.mxu0 0.0
    %610 = vmatpush2.msra.mxu0 0.0
    %611 = vmatprep.subr.mxu0 0.0
    %612 = vmatpush2.msra.mxu0 0.0
    %613 = vmatprep.subr.mxu0 0.0
    %614 = vmatpush2.msra.mxu0 0.0
    %615 = vmatprep.subr.mxu0 0.0
    %616 = vmatpush2.msra.mxu0 0.0
    %617 = vmatprep.subr.mxu0 0.0
    %618 = vmatpush2.msra.mxu0 0.0
    %619 = vmatprep.subr.mxu0 0.0
    %620 = vmatpush2.msra.mxu0 0.0
    %621 = vmatprep.subr.mxu0 0.0
    %622 = vmatpush2.msra.mxu0 0.0
    %623 = vmatprep.subr.mxu0 0.0
    %624 = vmatpush2.msra.mxu0 0.0
    %625 = vmatprep.subr.mxu0 0.0
    %626 = vmatpush2.msra.mxu0 0.0
    %627 = vmatprep.subr.mxu0 0.0
    %628 = vmatpush2.msra.mxu0 0.0
    %629 = vmatprep.subr.mxu0 0.0
    %630 = vmatpush2.msra.mxu0 0.0
    %631 = vmatprep.subr.mxu0 0.0
    %632 = vmatpush2.msra.mxu0 0.0
    %633 = vmatprep.subr.mxu0 0.0
    %634 = vmatpush2.msra.mxu0 0.0
    %635 = vmatprep.subr.mxu0 0.0
    %636 = vmatpush2.msra.mxu0 0.0
    %637 = vmatprep.subr.mxu0 0.0
    %638 = vmatpush2.msra.mxu0 0.0
    %639 = vmatprep.mubr.f32.mxu0 0.0
    %v640 = vand.u32 %v21, 4294901760
    %v641 = vsub.f32 %v21, %v640
    %v642 = vand.u32 %v641, 4294901760
    %643 = vmatmul.mubr.f32.gmra.mxu0 %v642
    %v644 = vpop.f32.mrf.mxu0
    %v645 = vadd.f32 %v539, %v644
    %v646 = vpop.f32.mrf.mxu0
    %v647 = vadd.f32 %v541, %v646
    %648 = vdwg.mxu0
    %v649 = vand.u32 %v53, 4294901760
    %v650 = vsub.f32 %v53, %v649
    %v651 = vand.u32 %v650, 4294901760
    %652 = vmatprep.subr.mxu0 %v651
    %v653 = vand.u32 %v52, 4294901760
    %v654 = vsub.f32 %v52, %v653
    %v655 = vand.u32 %v654, 4294901760
    %656 = vmatpush1.msra.mxu0 %v655
    %v657 = vand.u32 %v51, 4294901760
    %v658 = vsub.f32 %v51, %v657
    %v659 = vand.u32 %v658, 4294901760
    %660 = vmatprep.subr.mxu0 %v659
    %v661 = vand.u32 %v50, 4294901760
    %v662 = vsub.f32 %v50, %v661
    %v663 = vand.u32 %v662, 4294901760
    %664 = vmatpush1.msra.mxu0 %v663
    %v665 = vand.u32 %v49, 4294901760
    %v666 = vsub.f32 %v49, %v665
    %v667 = vand.u32 %v666, 4294901760
    %668 = vmatprep.subr.mxu0 %v667
    %v669 = vand.u32 %v48, 4294901760
    %v670 = vsub.f32 %v48, %v669
    %v671 = vand.u32 %v670, 4294901760
    %672 = vmatpush1.msra.mxu0 %v671
    %v673 = vand.u32 %v47, 4294901760
    %v674 = vsub.f32 %v47, %v673
    %v675 = vand.u32 %v674, 4294901760
    %676 = vmatprep.subr.mxu0 %v675
    %v677 = vand.u32 %v46, 4294901760
    %v678 = vsub.f32 %v46, %v677
    %v679 = vand.u32 %v678, 4294901760
    %680 = vmatpush1.msra.mxu0 %v679
    %v681 = vand.u32 %v45, 4294901760
    %v682 = vsub.f32 %v45, %v681
    %v683 = vand.u32 %v682, 4294901760
    %684 = vmatprep.subr.mxu0 %v683
    %v685 = vand.u32 %v44, 4294901760
    %v686 = vsub.f32 %v44, %v685
    %v687 = vand.u32 %v686, 4294901760
    %688 = vmatpush1.msra.mxu0 %v687
    %v689 = vand.u32 %v43, 4294901760
    %v690 = vsub.f32 %v43, %v689
    %v691 = vand.u32 %v690, 4294901760
    %692 = vmatprep.subr.mxu0 %v691
    %v693 = vand.u32 %v42, 4294901760
    %v694 = vsub.f32 %v42, %v693
    %v695 = vand.u32 %v694, 4294901760
    %696 = vmatpush1.msra.mxu0 %v695
    %v697 = vand.u32 %v41, 4294901760
    %v698 = vsub.f32 %v41, %v697
    %v699 = vand.u32 %v698, 4294901760
    %700 = vmatprep.subr.mxu0 %v699
    %v701 = vand.u32 %v40, 4294901760
    %v702 = vsub.f32 %v40, %v701
    %v703 = vand.u32 %v702, 4294901760
    %704 = vmatpush1.msra.mxu0 %v703
    %v705 = vand.u32 %v39, 4294901760
    %v706 = vsub.f32 %v39, %v705
    %v707 = vand.u32 %v706, 4294901760
    %708 = vmatprep.subr.mxu0 %v707
    %v709 = vand.u32 %v38, 4294901760
    %v710 = vsub.f32 %v38, %v709
    %v711 = vand.u32 %v710, 4294901760
    %712 = vmatpush1.msra.mxu0 %v711
    %v713 = vand.u32 %v37, 4294901760
    %v714 = vsub.f32 %v37, %v713
    %v715 = vand.u32 %v714, 4294901760
    %716 = vmatprep.subr.mxu0 %v715
    %v717 = vand.u32 %v36, 4294901760
    %v718 = vsub.f32 %v36, %v717
    %v719 = vand.u32 %v718, 4294901760
    %720 = vmatpush1.msra.mxu0 %v719
    %v721 = vand.u32 %v35, 4294901760
    %v722 = vsub.f32 %v35, %v721
    %v723 = vand.u32 %v722, 4294901760
    %724 = vmatprep.subr.mxu0 %v723
    %v725 = vand.u32 %v34, 4294901760
    %v726 = vsub.f32 %v34, %v725
    %v727 = vand.u32 %v726, 4294901760
    %728 = vmatpush1.msra.mxu0 %v727
    %v729 = vand.u32 %v33, 4294901760
    %v730 = vsub.f32 %v33, %v729
    %v731 = vand.u32 %v730, 4294901760
    %732 = vmatprep.subr.mxu0 %v731
    %v733 = vand.u32 %v32, 4294901760
    %v734 = vsub.f32 %v32, %v733
    %v735 = vand.u32 %v734, 4294901760
    %736 = vmatpush1.msra.mxu0 %v735
    %v737 = vand.u32 %v31, 4294901760
    %v738 = vsub.f32 %v31, %v737
    %v739 = vand.u32 %v738, 4294901760
    %740 = vmatprep.subr.mxu0 %v739
    %v741 = vand.u32 %v30, 4294901760
    %v742 = vsub.f32 %v30, %v741
    %v743 = vand.u32 %v742, 4294901760
    %744 = vmatpush1.msra.mxu0 %v743
    %v745 = vand.u32 %v29, 4294901760
    %v746 = vsub.f32 %v29, %v745
    %v747 = vand.u32 %v746, 4294901760
    %748 = vmatprep.subr.mxu0 %v747
    %v749 = vand.u32 %v28, 4294901760
    %v750 = vsub.f32 %v28, %v749
    %v751 = vand.u32 %v750, 4294901760
    %752 = vmatpush1.msra.mxu0 %v751
    %v753 = vand.u32 %v27, 4294901760
    %v754 = vsub.f32 %v27, %v753
    %v755 = vand.u32 %v754, 4294901760
    %756 = vmatprep.subr.mxu0 %v755
    %v757 = vand.u32 %v26, 4294901760
    %v758 = vsub.f32 %v26, %v757
    %v759 = vand.u32 %v758, 4294901760
    %760 = vmatpush1.msra.mxu0 %v759
    %v761 = vand.u32 %v25, 4294901760
    %v762 = vsub.f32 %v25, %v761
    %v763 = vand.u32 %v762, 4294901760
    %764 = vmatprep.subr.mxu0 %v763
    %v765 = vand.u32 %v24, 4294901760
    %v766 = vsub.f32 %v24, %v765
    %v767 = vand.u32 %v766, 4294901760
    %768 = vmatpush1.msra.mxu0 %v767
    %v769 = vand.u32 %v23, 4294901760
    %v770 = vsub.f32 %v23, %v769
    %v771 = vand.u32 %v770, 4294901760
    %772 = vmatprep.subr.mxu0 %v771
    %v773 = vand.u32 %v22, 4294901760
    %v774 = vsub.f32 %v22, %v773
    %v775 = vand.u32 %v774, 4294901760
    %776 = vmatpush1.msra.mxu0 %v775
    %777 = vmatprep.subr.mxu0 0.0
    %778 = vmatpush2.msra.mxu0 0.0
    %779 = vmatprep.subr.mxu0 0.0
    %780 = vmatpush2.msra.mxu0 0.0
    %781 = vmatprep.subr.mxu0 0.0
    %782 = vmatpush2.msra.mxu0 0.0
    %783 = vmatprep.subr.mxu0 0.0
    %784 = vmatpush2.msra.mxu0 0.0
    %785 = vmatprep.subr.mxu0 0.0
    %786 = vmatpush2.msra.mxu0 0.0
    %787 = vmatprep.subr.mxu0 0.0
    %788 = vmatpush2.msra.mxu0 0.0
    %789 = vmatprep.subr.mxu0 0.0
    %790 = vmatpush2.msra.mxu0 0.0
    %791 = vmatprep.subr.mxu0 0.0
    %792 = vmatpush2.msra.mxu0 0.0
    %793 = vmatprep.subr.mxu0 0.0
    %794 = vmatpush2.msra.mxu0 0.0
    %795 = vmatprep.subr.mxu0 0.0
    %796 = vmatpush2.msra.mxu0 0.0
    %797 = vmatprep.subr.mxu0 0.0
    %798 = vmatpush2.msra.mxu0 0.0
    %799 = vmatprep.subr.mxu0 0.0
    %800 = vmatpush2.msra.mxu0 0.0
    %801 = vmatprep.subr.mxu0 0.0
    %802 = vmatpush2.msra.mxu0 0.0
    %803 = vmatprep.subr.mxu0 0.0
    %804 = vmatpush2.msra.mxu0 0.0
    %805 = vmatprep.subr.mxu0 0.0
    %806 = vmatpush2.msra.mxu0 0.0
    %807 = vmatprep.subr.mxu0 0.0
    %808 = vmatpush2.msra.mxu0 0.0
    %809 = vmatprep.mubr.f32.mxu0 0.0
    %v810 = vand.u32 %v21, 4294901760
    %811 = vmatmul.mubr.f32.gmra.mxu0 %v810
    %v812 = vpop.f32.mrf.mxu0
    %v813 = vadd.f32 %v645, %v812
    %v814 = vpop.f32.mrf.mxu0
    %v815 = vadd.f32 %v647, %v814
    %816 = vdwg.mxu0
    %v817 = vand.u32 %v53, 4294901760
    %818 = vmatprep.subr.mxu0 %v817
    %v819 = vand.u32 %v52, 4294901760
    %820 = vmatpush1.msra.mxu0 %v819
    %v821 = vand.u32 %v51, 4294901760
    %822 = vmatprep.subr.mxu0 %v821
    %v823 = vand.u32 %v50, 4294901760
    %824 = vmatpush1.msra.mxu0 %v823
    %v825 = vand.u32 %v49, 4294901760
    %826 = vmatprep.subr.mxu0 %v825
    %v827 = vand.u32 %v48, 4294901760
    %828 = vmatpush1.msra.mxu0 %v827
    %v829 = vand.u32 %v47, 4294901760
    %830 = vmatprep.subr.mxu0 %v829
    %v831 = vand.u32 %v46, 4294901760
    %832 = vmatpush1.msra.mxu0 %v831
    %v833 = vand.u32 %v45, 4294901760
    %834 = vmatprep.subr.mxu0 %v833
    %v835 = vand.u32 %v44, 4294901760
    %836 = vmatpush1.msra.mxu0 %v835
    %v837 = vand.u32 %v43, 4294901760
    %838 = vmatprep.subr.mxu0 %v837
    %v839 = vand.u32 %v42, 4294901760
    %840 = vmatpush1.msra.mxu0 %v839
    %v841 = vand.u32 %v41, 4294901760
    %842 = vmatprep.subr.mxu0 %v841
    %v843 = vand.u32 %v40, 4294901760
    %844 = vmatpush1.msra.mxu0 %v843
    %v845 = vand.u32 %v39, 4294901760
    %846 = vmatprep.subr.mxu0 %v845
    %v847 = vand.u32 %v38, 4294901760
    %848 = vmatpush1.msra.mxu0 %v847
    %v849 = vand.u32 %v37, 4294901760
    %850 = vmatprep.subr.mxu0 %v849
    %v851 = vand.u32 %v36, 4294901760
    %852 = vmatpush1.msra.mxu0 %v851
    %v853 = vand.u32 %v35, 4294901760
    %854 = vmatprep.subr.mxu0 %v853
    %v855 = vand.u32 %v34, 4294901760
    %856 = vmatpush1.msra.mxu0 %v855
    %v857 = vand.u32 %v33, 4294901760
    %858 = vmatprep.subr.mxu0 %v857
    %v859 = vand.u32 %v32, 4294901760
    %860 = vmatpush1.msra.mxu0 %v859
    %v861 = vand.u32 %v31, 4294901760
    %862 = vmatprep.subr.mxu0 %v861
    %v863 = vand.u32 %v30, 4294901760
    %864 = vmatpush1.msra.mxu0 %v863
    %v865 = vand.u32 %v29, 4294901760
    %866 = vmatprep.subr.mxu0 %v865
    %v867 = vand.u32 %v28, 4294901760
    %868 = vmatpush1.msra.mxu0 %v867
    %v869 = vand.u32 %v27, 4294901760
    %870 = vmatprep.subr.mxu0 %v869
    %v871 = vand.u32 %v26, 4294901760
    %872 = vmatpush1.msra.mxu0 %v871
    %v873 = vand.u32 %v25, 4294901760
    %874 = vmatprep.subr.mxu0 %v873
    %v875 = vand.u32 %v24, 4294901760
    %876 = vmatpush1.msra.mxu0 %v875
    %v877 = vand.u32 %v23, 4294901760
    %878 = vmatprep.subr.mxu0 %v877
    %v879 = vand.u32 %v22, 4294901760
    %880 = vmatpush1.msra.mxu0 %v879
    %881 = vmatprep.subr.mxu0 0.0
    %882 = vmatpush2.msra.mxu0 0.0
    %883 = vmatprep.subr.mxu0 0.0
    %884 = vmatpush2.msra.mxu0 0.0
    %885 = vmatprep.subr.mxu0 0.0
    %886 = vmatpush2.msra.mxu0 0.0
    %887 = vmatprep.subr.mxu0 0.0
    %888 = vmatpush2.msra.mxu0 0.0
    %889 = vmatprep.subr.mxu0 0.0
    %890 = vmatpush2.msra.mxu0 0.0
    %891 = vmatprep.subr.mxu0 0.0
    %892 = vmatpush2.msra.mxu0 0.0
    %893 = vmatprep.subr.mxu0 0.0
    %894 = vmatpush2.msra.mxu0 0.0
    %895 = vmatprep.subr.mxu0 0.0
    %896 = vmatpush2.msra.mxu0 0.0
    %897 = vmatprep.subr.mxu0 0.0
    %898 = vmatpush2.msra.mxu0 0.0
    %899 = vmatprep.subr.mxu0 0.0
    %900 = vmatpush2.msra.mxu0 0.0
    %901 = vmatprep.subr.mxu0 0.0
    %902 = vmatpush2.msra.mxu0 0.0
    %903 = vmatprep.subr.mxu0 0.0
    %904 = vmatpush2.msra.mxu0 0.0
    %905 = vmatprep.subr.mxu0 0.0
    %906 = vmatpush2.msra.mxu0 0.0
    %907 = vmatprep.subr.mxu0 0.0
    %908 = vmatpush2.msra.mxu0 0.0
    %909 = vmatprep.subr.mxu0 0.0
    %910 = vmatpush2.msra.mxu0 0.0
    %911 = vmatprep.subr.mxu0 0.0
    %912 = vmatpush2.msra.mxu0 0.0
    %913 = vmatprep.mubr.f32.mxu0 0.0
    %v914 = vand.u32 %v21, 4294901760
    %915 = vmatmul.mubr.f32.gmra.mxu0 %v914
    %v916 = vpop.f32.mrf.mxu0
    %v917 = vadd.f32 %v813, %v916
    %v918 = vpop.f32.mrf.mxu0
    %v919 = vadd.f32 %v815, %v918
    %920 = vdwg.mxu0
    %v921 = vtanh.pop %v917
    %v922 = vtanh.pop %v919
    %v923 = vld [vmem:[%s3] sm:$0xff]
    %v924 = vld [vmem:[%s3 + $0x8] sm:$0xff]
    %v925 = vld [vmem:[%s3 + $0x10] sm:$0xff]
    %v926 = vld [vmem:[%s3 + $0x18] sm:$0xff]
    %v927 = vld [vmem:[%s3 + $0x20] sm:$0xff]
    %v928 = vld [vmem:[%s3 + $0x28] sm:$0xff]
    %v929 = vld [vmem:[%s3 + $0x30] sm:$0xff]
    %v930 = vld [vmem:[%s3 + $0x38] sm:$0xff]
    %v931 = vld [vmem:[%s3 + $0x40] sm:$0xff]
    %v932 = vld [vmem:[%s3 + $0x48] sm:$0xff]
    %v933 = vld [vmem:[%s3 + $0x50] sm:$0xff]
    %v934 = vld [vmem:[%s3 + $0x58] sm:$0xff]
    %v935 = vld [vmem:[%s3 + $0x60] sm:$0xff]
    %v936 = vld [vmem:[%s3 + $0x68] sm:$0xff]
    %v937 = vld [vmem:[%s3 + $0x70] sm:$0xff]
    %v938 = vld [vmem:[%s3 + $0x78] sm:$0xff]
    %v939 = vld [vmem:[%s3 + $0x80] sm:$0xff]
    %v940 = vld [vmem:[%s3 + $0x88] sm:$0xff]
    %v941 = vld [vmem:[%s3 + $0x90] sm:$0xff]
    %v942 = vld [vmem:[%s3 + $0x98] sm:$0xff]
    %v943 = vld [vmem:[%s3 + $0xa0] sm:$0xff]
    %v944 = vld [vmem:[%s3 + $0xa8] sm:$0xff]
    %v945 = vld [vmem:[%s3 + $0xb0] sm:$0xff]
    %v946 = vld [vmem:[%s3 + $0xb8] sm:$0xff]
    %v947 = vld [vmem:[%s3 + $0xc0] sm:$0xff]
    %v948 = vld [vmem:[%s3 + $0xc8] sm:$0xff]
    %v949 = vld [vmem:[%s3 + $0xd0] sm:$0xff]
    %v950 = vld [vmem:[%s3 + $0xd8] sm:$0xff]
    %v951 = vld [vmem:[%s3 + $0xe0] sm:$0xff]
    %v952 = vld [vmem:[%s3 + $0xe8] sm:$0xff]
    %v953 = vld [vmem:[%s3 + $0xf0] sm:$0xff]
    %v954 = vld [vmem:[%s3 + $0xf8] sm:$0xff]
    %v955 = vld [vmem:[%s4] sm:$0x1]
    %v957 = vlaneseq
    %v958 = vshrl.u32 %v957, 7
    %v959 = vsub.s32 0, %v958
    %v960 = vrot.slane %v955, %v959
    %962 = vmatprep.subr.mxu0 0.0
    %v963 = vand.u32 %v938, 4294901760
    %964 = vmatpush1.msra.mxu0 %v963
    %965 = vmatprep.subr.mxu0 0.0
    %v966 = vand.u32 %v937, 4294901760
    %967 = vmatpush1.msra.mxu0 %v966
    %968 = vmatprep.subr.mxu0 0.0
    %v969 = vand.u32 %v936, 4294901760
    %970 = vmatpush1.msra.mxu0 %v969
    %971 = vmatprep.subr.mxu0 0.0
    %v972 = vand.u32 %v935, 4294901760
    %973 = vmatpush1.msra.mxu0 %v972
    %974 = vmatprep.subr.mxu0 0.0
    %v975 = vand.u32 %v934, 4294901760
    %976 = vmatpush1.msra.mxu0 %v975
    %977 = vmatprep.subr.mxu0 0.0
    %v978 = vand.u32 %v933, 4294901760
    %979 = vmatpush1.msra.mxu0 %v978
    %980 = vmatprep.subr.mxu0 0.0
    %v981 = vand.u32 %v932, 4294901760
    %982 = vmatpush1.msra.mxu0 %v981
    %983 = vmatprep.subr.mxu0 0.0
    %v984 = vand.u32 %v931, 4294901760
    %985 = vmatpush1.msra.mxu0 %v984
    %986 = vmatprep.subr.mxu0 0.0
    %v987 = vand.u32 %v930, 4294901760
    %988 = vmatpush1.msra.mxu0 %v987
    %989 = vmatprep.subr.mxu0 0.0
    %v990 = vand.u32 %v929, 4294901760
    %991 = vmatpush1.msra.mxu0 %v990
    %992 = vmatprep.subr.mxu0 0.0
    %v993 = vand.u32 %v928, 4294901760
    %994 = vmatpush1.msra.mxu0 %v993
    %995 = vmatprep.subr.mxu0 0.0
    %v996 = vand.u32 %v927, 4294901760
    %997 = vmatpush1.msra.mxu0 %v996
    %998 = vmatprep.subr.mxu0 0.0
    %v999 = vand.u32 %v926, 4294901760
    %1000 = vmatpush1.msra.mxu0 %v999
    %1001 = vmatprep.subr.mxu0 0.0
    %v1002 = vand.u32 %v925, 4294901760
    %1003 = vmatpush1.msra.mxu0 %v1002
    %1004 = vmatprep.subr.mxu0 0.0
    %v1005 = vand.u32 %v924, 4294901760
    %1006 = vmatpush1.msra.mxu0 %v1005
    %1007 = vmatprep.subr.mxu0 0.0
    %v1008 = vand.u32 %v923, 4294901760
    %1009 = vmatpush1.msra.mxu0 %v1008
    %1010 = vmatprep.subr.mxu0 0.0
    %v1011 = vand.u32 %v954, 4294901760
    %1012 = vmatpush2.msra.mxu0 %v1011
    %1013 = vmatprep.subr.mxu0 0.0
    %v1014 = vand.u32 %v953, 4294901760
    %1015 = vmatpush2.msra.mxu0 %v1014
    %1016 = vmatprep.subr.mxu0 0.0
    %v1017 = vand.u32 %v952, 4294901760
    %1018 = vmatpush2.msra.mxu0 %v1017
    %1019 = vmatprep.subr.mxu0 0.0
    %v1020 = vand.u32 %v951, 4294901760
    %1021 = vmatpush2.msra.mxu0 %v1020
    %1022 = vmatprep.subr.mxu0 0.0
    %v1023 = vand.u32 %v950, 4294901760
    %1024 = vmatpush2.msra.mxu0 %v1023
    %1025 = vmatprep.subr.mxu0 0.0
    %v1026 = vand.u32 %v949, 4294901760
    %1027 = vmatpush2.msra.mxu0 %v1026
    %1028 = vmatprep.subr.mxu0 0.0
    %v1029 = vand.u32 %v948, 4294901760
    %1030 = vmatpush2.msra.mxu0 %v1029
    %1031 = vmatprep.subr.mxu0 0.0
    %v1032 = vand.u32 %v947, 4294901760
    %1033 = vmatpush2.msra.mxu0 %v1032
    %1034 = vmatprep.subr.mxu0 0.0
    %v1035 = vand.u32 %v946, 4294901760
    %1036 = vmatpush2.msra.mxu0 %v1035
    %1037 = vmatprep.subr.mxu0 0.0
    %v1038 = vand.u32 %v945, 4294901760
    %1039 = vmatpush2.msra.mxu0 %v1038
    %1040 = vmatprep.subr.mxu0 0.0
    %v1041 = vand.u32 %v944, 4294901760
    %1042 = vmatpush2.msra.mxu0 %v1041
    %1043 = vmatprep.subr.mxu0 0.0
    %v1044 = vand.u32 %v943, 4294901760
    %1045 = vmatpush2.msra.mxu0 %v1044
    %1046 = vmatprep.subr.mxu0 0.0
    %v1047 = vand.u32 %v942, 4294901760
    %1048 = vmatpush2.msra.mxu0 %v1047
    %1049 = vmatprep.subr.mxu0 0.0
    %v1050 = vand.u32 %v941, 4294901760
    %1051 = vmatpush2.msra.mxu0 %v1050
    %1052 = vmatprep.subr.mxu0 0.0
    %v1053 = vand.u32 %v940, 4294901760
    %1054 = vmatpush2.msra.mxu0 %v1053
    %1055 = vmatprep.subr.mxu0 0.0
    %v1056 = vand.u32 %v939, 4294901760
    %1057 = vmatpush2.msra.mxu0 %v1056
    %v1058 = vand.u32 %v922, 4294901760
    %v1059 = vsub.f32 %v922, %v1058
    %v1060 = vand.u32 %v1059, 4294901760
    %v1061 = vsub.f32 %v1059, %v1060
    %v1062 = vand.u32 %v1061, 4294901760
    %1063 = vmatprep.mubr.f32.mxu0 %v1062
    %v1064 = vand.u32 %v921, 4294901760
    %v1065 = vsub.f32 %v921, %v1064
    %v1066 = vand.u32 %v1065, 4294901760
    %v1067 = vsub.f32 %v1065, %v1066
    %v1068 = vand.u32 %v1067, 4294901760
    %1069 = vmatmul.mubr.f32.gmra.mxu0 %v1068
    %v1070 = vpop.f32.mrf.mxu0
    %v1071 = vadd.f32 %v960, %v1070
    %v1072 = vpop.f32.mrf.mxu0
    %1073 = vdwg.mxu0
    %1074 = vmatprep.subr.mxu0 0.0
    %v1075 = vand.u32 %v938, 4294901760
    %v1076 = vsub.f32 %v938, %v1075
    %v1077 = vand.u32 %v1076, 4294901760
    %v1078 = vsub.f32 %v1076, %v1077
    %v1079 = vand.u32 %v1078, 4294901760
    %1080 = vmatpush1.msra.mxu0 %v1079
    %1081 = vmatprep.subr.mxu0 0.0
    %v1082 = vand.u32 %v937, 4294901760
    %v1083 = vsub.f32 %v937, %v1082
    %v1084 = vand.u32 %v1083, 4294901760
    %v1085 = vsub.f32 %v1083, %v1084
    %v1086 = vand.u32 %v1085, 4294901760
    %1087 = vmatpush1.msra.mxu0 %v1086
    %1088 = vmatprep.subr.mxu0 0.0
    %v1089 = vand.u32 %v936, 4294901760
    %v1090 = vsub.f32 %v936, %v1089
    %v1091 = vand.u32 %v1090, 4294901760
    %v1092 = vsub.f32 %v1090, %v1091
    %v1093 = vand.u32 %v1092, 4294901760
    %1094 = vmatpush1.msra.mxu0 %v1093
    %1095 = vmatprep.subr.mxu0 0.0
    %v1096 = vand.u32 %v935, 4294901760
    %v1097 = vsub.f32 %v935, %v1096
    %v1098 = vand.u32 %v1097, 4294901760
    %v1099 = vsub.f32 %v1097, %v1098
    %v1100 = vand.u32 %v1099, 4294901760
    %1101 = vmatpush1.msra.mxu0 %v1100
    %1102 = vmatprep.subr.mxu0 0.0
    %v1103 = vand.u32 %v934, 4294901760
    %v1104 = vsub.f32 %v934, %v1103
    %v1105 = vand.u32 %v1104, 4294901760
    %v1106 = vsub.f32 %v1104, %v1105
    %v1107 = vand.u32 %v1106, 4294901760
    %1108 = vmatpush1.msra.mxu0 %v1107
    %1109 = vmatprep.subr.mxu0 0.0
    %v1110 = vand.u32 %v933, 4294901760
    %v1111 = vsub.f32 %v933, %v1110
    %v1112 = vand.u32 %v1111, 4294901760
    %v1113 = vsub.f32 %v1111, %v1112
    %v1114 = vand.u32 %v1113, 4294901760
    %1115 = vmatpush1.msra.mxu0 %v1114
    %1116 = vmatprep.subr.mxu0 0.0
    %v1117 = vand.u32 %v932, 4294901760
    %v1118 = vsub.f32 %v932, %v1117
    %v1119 = vand.u32 %v1118, 4294901760
    %v1120 = vsub.f32 %v1118, %v1119
    %v1121 = vand.u32 %v1120, 4294901760
    %1122 = vmatpush1.msra.mxu0 %v1121
    %1123 = vmatprep.subr.mxu0 0.0
    %v1124 = vand.u32 %v931, 4294901760
    %v1125 = vsub.f32 %v931, %v1124
    %v1126 = vand.u32 %v1125, 4294901760
    %v1127 = vsub.f32 %v1125, %v1126
    %v1128 = vand.u32 %v1127, 4294901760
    %1129 = vmatpush1.msra.mxu0 %v1128
    %1130 = vmatprep.subr.mxu0 0.0
    %v1131 = vand.u32 %v930, 4294901760
    %v1132 = vsub.f32 %v930, %v1131
    %v1133 = vand.u32 %v1132, 4294901760
    %v1134 = vsub.f32 %v1132, %v1133
    %v1135 = vand.u32 %v1134, 4294901760
    %1136 = vmatpush1.msra.mxu0 %v1135
    %1137 = vmatprep.subr.mxu0 0.0
    %v1138 = vand.u32 %v929, 4294901760
    %v1139 = vsub.f32 %v929, %v1138
    %v1140 = vand.u32 %v1139, 4294901760
    %v1141 = vsub.f32 %v1139, %v1140
    %v1142 = vand.u32 %v1141, 4294901760
    %1143 = vmatpush1.msra.mxu0 %v1142
    %1144 = vmatprep.subr.mxu0 0.0
    %v1145 = vand.u32 %v928, 4294901760
    %v1146 = vsub.f32 %v928, %v1145
    %v1147 = vand.u32 %v1146, 4294901760
    %v1148 = vsub.f32 %v1146, %v1147
    %v1149 = vand.u32 %v1148, 4294901760
    %1150 = vmatpush1.msra.mxu0 %v1149
    %1151 = vmatprep.subr.mxu0 0.0
    %v1152 = vand.u32 %v927, 4294901760
    %v1153 = vsub.f32 %v927, %v1152
    %v1154 = vand.u32 %v1153, 4294901760
    %v1155 = vsub.f32 %v1153, %v1154
    %v1156 = vand.u32 %v1155, 4294901760
    %1157 = vmatpush1.msra.mxu0 %v1156
    %1158 = vmatprep.subr.mxu0 0.0
    %v1159 = vand.u32 %v926, 4294901760
    %v1160 = vsub.f32 %v926, %v1159
    %v1161 = vand.u32 %v1160, 4294901760
    %v1162 = vsub.f32 %v1160, %v1161
    %v1163 = vand.u32 %v1162, 4294901760
    %1164 = vmatpush1.msra.mxu0 %v1163
    %1165 = vmatprep.subr.mxu0 0.0
    %v1166 = vand.u32 %v925, 4294901760
    %v1167 = vsub.f32 %v925, %v1166
    %v1168 = vand.u32 %v1167, 4294901760
    %v1169 = vsub.f32 %v1167, %v1168
    %v1170 = vand.u32 %v1169, 4294901760
    %1171 = vmatpush1.msra.mxu0 %v1170
    %1172 = vmatprep.subr.mxu0 0.0
    %v1173 = vand.u32 %v924, 4294901760
    %v1174 = vsub.f32 %v924, %v1173
    %v1175 = vand.u32 %v1174, 4294901760
    %v1176 = vsub.f32 %v1174, %v1175
    %v1177 = vand.u32 %v1176, 4294901760
    %1178 = vmatpush1.msra.mxu0 %v1177
    %1179 = vmatprep.subr.mxu0 0.0
    %v1180 = vand.u32 %v923, 4294901760
    %v1181 = vsub.f32 %v923, %v1180
    %v1182 = vand.u32 %v1181, 4294901760
    %v1183 = vsub.f32 %v1181, %v1182
    %v1184 = vand.u32 %v1183, 4294901760
    %1185 = vmatpush1.msra.mxu0 %v1184
    %1186 = vmatprep.subr.mxu0 0.0
    %v1187 = vand.u32 %v954, 4294901760
    %v1188 = vsub.f32 %v954, %v1187
    %v1189 = vand.u32 %v1188, 4294901760
    %v1190 = vsub.f32 %v1188, %v1189
    %v1191 = vand.u32 %v1190, 4294901760
    %1192 = vmatpush2.msra.mxu0 %v1191
    %1193 = vmatprep.subr.mxu0 0.0
    %v1194 = vand.u32 %v953, 4294901760
    %v1195 = vsub.f32 %v953, %v1194
    %v1196 = vand.u32 %v1195, 4294901760
    %v1197 = vsub.f32 %v1195, %v1196
    %v1198 = vand.u32 %v1197, 4294901760
    %1199 = vmatpush2.msra.mxu0 %v1198
    %1200 = vmatprep.subr.mxu0 0.0
    %v1201 = vand.u32 %v952, 4294901760
    %v1202 = vsub.f32 %v952, %v1201
    %v1203 = vand.u32 %v1202, 4294901760
    %v1204 = vsub.f32 %v1202, %v1203
    %v1205 = vand.u32 %v1204, 4294901760
    %1206 = vmatpush2.msra.mxu0 %v1205
    %1207 = vmatprep.subr.mxu0 0.0
    %v1208 = vand.u32 %v951, 4294901760
    %v1209 = vsub.f32 %v951, %v1208
    %v1210 = vand.u32 %v1209, 4294901760
    %v1211 = vsub.f32 %v1209, %v1210
    %v1212 = vand.u32 %v1211, 4294901760
    %1213 = vmatpush2.msra.mxu0 %v1212
    %1214 = vmatprep.subr.mxu0 0.0
    %v1215 = vand.u32 %v950, 4294901760
    %v1216 = vsub.f32 %v950, %v1215
    %v1217 = vand.u32 %v1216, 4294901760
    %v1218 = vsub.f32 %v1216, %v1217
    %v1219 = vand.u32 %v1218, 4294901760
    %1220 = vmatpush2.msra.mxu0 %v1219
    %1221 = vmatprep.subr.mxu0 0.0
    %v1222 = vand.u32 %v949, 4294901760
    %v1223 = vsub.f32 %v949, %v1222
    %v1224 = vand.u32 %v1223, 4294901760
    %v1225 = vsub.f32 %v1223, %v1224
    %v1226 = vand.u32 %v1225, 4294901760
    %1227 = vmatpush2.msra.mxu0 %v1226
    %1228 = vmatprep.subr.mxu0 0.0
    %v1229 = vand.u32 %v948, 4294901760
    %v1230 = vsub.f32 %v948, %v1229
    %v1231 = vand.u32 %v1230, 4294901760
    %v1232 = vsub.f32 %v1230, %v1231
    %v1233 = vand.u32 %v1232, 4294901760
    %1234 = vmatpush2.msra.mxu0 %v1233
    %1235 = vmatprep.subr.mxu0 0.0
    %v1236 = vand.u32 %v947, 4294901760
    %v1237 = vsub.f32 %v947, %v1236
    %v1238 = vand.u32 %v1237, 4294901760
    %v1239 = vsub.f32 %v1237, %v1238
    %v1240 = vand.u32 %v1239, 4294901760
    %1241 = vmatpush2.msra.mxu0 %v1240
    %1242 = vmatprep.subr.mxu0 0.0
    %v1243 = vand.u32 %v946, 4294901760
    %v1244 = vsub.f32 %v946, %v1243
    %v1245 = vand.u32 %v1244, 4294901760
    %v1246 = vsub.f32 %v1244, %v1245
    %v1247 = vand.u32 %v1246, 4294901760
    %1248 = vmatpush2.msra.mxu0 %v1247
    %1249 = vmatprep.subr.mxu0 0.0
    %v1250 = vand.u32 %v945, 4294901760
    %v1251 = vsub.f32 %v945, %v1250
    %v1252 = vand.u32 %v1251, 4294901760
    %v1253 = vsub.f32 %v1251, %v1252
    %v1254 = vand.u32 %v1253, 4294901760
    %1255 = vmatpush2.msra.mxu0 %v1254
    %1256 = vmatprep.subr.mxu0 0.0
    %v1257 = vand.u32 %v944, 4294901760
    %v1258 = vsub.f32 %v944, %v1257
    %v1259 = vand.u32 %v1258, 4294901760
    %v1260 = vsub.f32 %v1258, %v1259
    %v1261 = vand.u32 %v1260, 4294901760
    %1262 = vmatpush2.msra.mxu0 %v1261
    %1263 = vmatprep.subr.mxu0 0.0
    %v1264 = vand.u32 %v943, 4294901760
    %v1265 = vsub.f32 %v943, %v1264
    %v1266 = vand.u32 %v1265, 4294901760
    %v1267 = vsub.f32 %v1265, %v1266
    %v1268 = vand.u32 %v1267, 4294901760
    %1269 = vmatpush2.msra.mxu0 %v1268
    %1270 = vmatprep.subr.mxu0 0.0
    %v1271 = vand.u32 %v942, 4294901760
    %v1272 = vsub.f32 %v942, %v1271
    %v1273 = vand.u32 %v1272, 4294901760
    %v1274 = vsub.f32 %v1272, %v1273
    %v1275 = vand.u32 %v1274, 4294901760
    %1276 = vmatpush2.msra.mxu0 %v1275
    %1277 = vmatprep.subr.mxu0 0.0
    %v1278 = vand.u32 %v941, 4294901760
    %v1279 = vsub.f32 %v941, %v1278
    %v1280 = vand.u32 %v1279, 4294901760
    %v1281 = vsub.f32 %v1279, %v1280
    %v1282 = vand.u32 %v1281, 4294901760
    %1283 = vmatpush2.msra.mxu0 %v1282
    %1284 = vmatprep.subr.mxu0 0.0
    %v1285 = vand.u32 %v940, 4294901760
    %v1286 = vsub.f32 %v940, %v1285
    %v1287 = vand.u32 %v1286, 4294901760
    %v1288 = vsub.f32 %v1286, %v1287
    %v1289 = vand.u32 %v1288, 4294901760
    %1290 = vmatpush2.msra.mxu0 %v1289
    %1291 = vmatprep.subr.mxu0 0.0
    %v1292 = vand.u32 %v939, 4294901760
    %v1293 = vsub.f32 %v939, %v1292
    %v1294 = vand.u32 %v1293, 4294901760
    %v1295 = vsub.f32 %v1293, %v1294
    %v1296 = vand.u32 %v1295, 4294901760
    %1297 = vmatpush2.msra.mxu0 %v1296
    %v1298 = vand.u32 %v922, 4294901760
    %1299 = vmatprep.mubr.f32.mxu0 %v1298
    %v1300 = vand.u32 %v921, 4294901760
    %1301 = vmatmul.mubr.f32.gmra.mxu0 %v1300
    %v1302 = vpop.f32.mrf.mxu0
    %v1303 = vadd.f32 %v1071, %v1302
    %v1304 = vpop.f32.mrf.mxu0
    %1305 = vdwg.mxu0
    %1306 = vmatprep.subr.mxu0 0.0
    %v1307 = vand.u32 %v938, 4294901760
    %v1308 = vsub.f32 %v938, %v1307
    %1309 = vmatpush1.msra.mxu0 %v1308
    %1310 = vmatprep.subr.mxu0 0.0
    %v1311 = vand.u32 %v937, 4294901760
    %v1312 = vsub.f32 %v937, %v1311
    %1313 = vmatpush1.msra.mxu0 %v1312
    %1314 = vmatprep.subr.mxu0 0.0
    %v1315 = vand.u32 %v936, 4294901760
    %v1316 = vsub.f32 %v936, %v1315
    %1317 = vmatpush1.msra.mxu0 %v1316
    %1318 = vmatprep.subr.mxu0 0.0
    %v1319 = vand.u32 %v935, 4294901760
    %v1320 = vsub.f32 %v935, %v1319
    %1321 = vmatpush1.msra.mxu0 %v1320
    %1322 = vmatprep.subr.mxu0 0.0
    %v1323 = vand.u32 %v934, 4294901760
    %v1324 = vsub.f32 %v934, %v1323
    %1325 = vmatpush1.msra.mxu0 %v1324
    %1326 = vmatprep.subr.mxu0 0.0
    %v1327 = vand.u32 %v933, 4294901760
    %v1328 = vsub.f32 %v933, %v1327
    %1329 = vmatpush1.msra.mxu0 %v1328
    %1330 = vmatprep.subr.mxu0 0.0
    %v1331 = vand.u32 %v932, 4294901760
    %v1332 = vsub.f32 %v932, %v1331
    %1333 = vmatpush1.msra.mxu0 %v1332
    %1334 = vmatprep.subr.mxu0 0.0
    %v1335 = vand.u32 %v931, 4294901760
    %v1336 = vsub.f32 %v931, %v1335
    %1337 = vmatpush1.msra.mxu0 %v1336
    %1338 = vmatprep.subr.mxu0 0.0
    %v1339 = vand.u32 %v930, 4294901760
    %v1340 = vsub.f32 %v930, %v1339
    %1341 = vmatpush1.msra.mxu0 %v1340
    %1342 = vmatprep.subr.mxu0 0.0
    %v1343 = vand.u32 %v929, 4294901760
    %v1344 = vsub.f32 %v929, %v1343
    %1345 = vmatpush1.msra.mxu0 %v1344
    %1346 = vmatprep.subr.mxu0 0.0
    %v1347 = vand.u32 %v928, 4294901760
    %v1348 = vsub.f32 %v928, %v1347
    %1349 = vmatpush1.msra.mxu0 %v1348
    %1350 = vmatprep.subr.mxu0 0.0
    %v1351 = vand.u32 %v927, 4294901760
    %v1352 = vsub.f32 %v927, %v1351
    %1353 = vmatpush1.msra.mxu0 %v1352
    %1354 = vmatprep.subr.mxu0 0.0
    %v1355 = vand.u32 %v926, 4294901760
    %v1356 = vsub.f32 %v926, %v1355
    %1357 = vmatpush1.msra.mxu0 %v1356
    %1358 = vmatprep.subr.mxu0 0.0
    %v1359 = vand.u32 %v925, 4294901760
    %v1360 = vsub.f32 %v925, %v1359
    %1361 = vmatpush1.msra.mxu0 %v1360
    %1362 = vmatprep.subr.mxu0 0.0
    %v1363 = vand.u32 %v924, 4294901760
    %v1364 = vsub.f32 %v924, %v1363
    %1365 = vmatpush1.msra.mxu0 %v1364
    %1366 = vmatprep.subr.mxu0 0.0
    %v1367 = vand.u32 %v923, 4294901760
    %v1368 = vsub.f32 %v923, %v1367
    %1369 = vmatpush1.msra.mxu0 %v1368
    %1370 = vmatprep.subr.mxu0 0.0
    %v1371 = vand.u32 %v954, 4294901760
    %v1372 = vsub.f32 %v954, %v1371
    %1373 = vmatpush2.msra.mxu0 %v1372
    %1374 = vmatprep.subr.mxu0 0.0
    %v1375 = vand.u32 %v953, 4294901760
    %v1376 = vsub.f32 %v953, %v1375
    %1377 = vmatpush2.msra.mxu0 %v1376
    %1378 = vmatprep.subr.mxu0 0.0
    %v1379 = vand.u32 %v952, 4294901760
    %v1380 = vsub.f32 %v952, %v1379
    %1381 = vmatpush2.msra.mxu0 %v1380
    %1382 = vmatprep.subr.mxu0 0.0
    %v1383 = vand.u32 %v951, 4294901760
    %v1384 = vsub.f32 %v951, %v1383
    %1385 = vmatpush2.msra.mxu0 %v1384
    %1386 = vmatprep.subr.mxu0 0.0
    %v1387 = vand.u32 %v950, 4294901760
    %v1388 = vsub.f32 %v950, %v1387
    %1389 = vmatpush2.msra.mxu0 %v1388
    %1390 = vmatprep.subr.mxu0 0.0
    %v1391 = vand.u32 %v949, 4294901760
    %v1392 = vsub.f32 %v949, %v1391
    %1393 = vmatpush2.msra.mxu0 %v1392
    %1394 = vmatprep.subr.mxu0 0.0
    %v1395 = vand.u32 %v948, 4294901760
    %v1396 = vsub.f32 %v948, %v1395
    %1397 = vmatpush2.msra.mxu0 %v1396
    %1398 = vmatprep.subr.mxu0 0.0
    %v1399 = vand.u32 %v947, 4294901760
    %v1400 = vsub.f32 %v947, %v1399
    %1401 = vmatpush2.msra.mxu0 %v1400
    %1402 = vmatprep.subr.mxu0 0.0
    %v1403 = vand.u32 %v946, 4294901760
    %v1404 = vsub.f32 %v946, %v1403
    %1405 = vmatpush2.msra.mxu0 %v1404
    %1406 = vmatprep.subr.mxu0 0.0
    %v1407 = vand.u32 %v945, 4294901760
    %v1408 = vsub.f32 %v945, %v1407
    %1409 = vmatpush2.msra.mxu0 %v1408
    %1410 = vmatprep.subr.mxu0 0.0
    %v1411 = vand.u32 %v944, 4294901760
    %v1412 = vsub.f32 %v944, %v1411
    %1413 = vmatpush2.msra.mxu0 %v1412
    %1414 = vmatprep.subr.mxu0 0.0
    %v1415 = vand.u32 %v943, 4294901760
    %v1416 = vsub.f32 %v943, %v1415
    %1417 = vmatpush2.msra.mxu0 %v1416
    %1418 = vmatprep.subr.mxu0 0.0
    %v1419 = vand.u32 %v942, 4294901760
    %v1420 = vsub.f32 %v942, %v1419
    %1421 = vmatpush2.msra.mxu0 %v1420
    %1422 = vmatprep.subr.mxu0 0.0
    %v1423 = vand.u32 %v941, 4294901760
    %v1424 = vsub.f32 %v941, %v1423
    %1425 = vmatpush2.msra.mxu0 %v1424
    %1426 = vmatprep.subr.mxu0 0.0
    %v1427 = vand.u32 %v940, 4294901760
    %v1428 = vsub.f32 %v940, %v1427
    %1429 = vmatpush2.msra.mxu0 %v1428
    %1430 = vmatprep.subr.mxu0 0.0
    %v1431 = vand.u32 %v939, 4294901760
    %v1432 = vsub.f32 %v939, %v1431
    %1433 = vmatpush2.msra.mxu0 %v1432
    %v1434 = vand.u32 %v922, 4294901760
    %v1435 = vsub.f32 %v922, %v1434
    %1436 = vmatprep.mubr.f32.mxu0 %v1435
    %v1437 = vand.u32 %v921, 4294901760
    %v1438 = vsub.f32 %v921, %v1437
    %1439 = vmatmul.mubr.f32.gmra.mxu0 %v1438
    %v1440 = vpop.f32.mrf.mxu0
    %v1441 = vadd.f32 %v1303, %v1440
    %v1442 = vpop.f32.mrf.mxu0
    %1443 = vdwg.mxu0
    %1444 = vmatprep.subr.mxu0 0.0
    %v1445 = vand.u32 %v938, 4294901760
    %1446 = vmatpush1.msra.mxu0 %v1445
    %1447 = vmatprep.subr.mxu0 0.0
    %v1448 = vand.u32 %v937, 4294901760
    %1449 = vmatpush1.msra.mxu0 %v1448
    %1450 = vmatprep.subr.mxu0 0.0
    %v1451 = vand.u32 %v936, 4294901760
    %1452 = vmatpush1.msra.mxu0 %v1451
    %1453 = vmatprep.subr.mxu0 0.0
    %v1454 = vand.u32 %v935, 4294901760
    %1455 = vmatpush1.msra.mxu0 %v1454
    %1456 = vmatprep.subr.mxu0 0.0
    %v1457 = vand.u32 %v934, 4294901760
    %1458 = vmatpush1.msra.mxu0 %v1457
    %1459 = vmatprep.subr.mxu0 0.0
    %v1460 = vand.u32 %v933, 4294901760
    %1461 = vmatpush1.msra.mxu0 %v1460
    %1462 = vmatprep.subr.mxu0 0.0
    %v1463 = vand.u32 %v932, 4294901760
    %1464 = vmatpush1.msra.mxu0 %v1463
    %1465 = vmatprep.subr.mxu0 0.0
    %v1466 = vand.u32 %v931, 4294901760
    %1467 = vmatpush1.msra.mxu0 %v1466
    %1468 = vmatprep.subr.mxu0 0.0
    %v1469 = vand.u32 %v930, 4294901760
    %1470 = vmatpush1.msra.mxu0 %v1469
    %1471 = vmatprep.subr.mxu0 0.0
    %v1472 = vand.u32 %v929, 4294901760
    %1473 = vmatpush1.msra.mxu0 %v1472
    %1474 = vmatprep.subr.mxu0 0.0
    %v1475 = vand.u32 %v928, 4294901760
    %1476 = vmatpush1.msra.mxu0 %v1475
    %1477 = vmatprep.subr.mxu0 0.0
    %v1478 = vand.u32 %v927, 4294901760
    %1479 = vmatpush1.msra.mxu0 %v1478
    %1480 = vmatprep.subr.mxu0 0.0
    %v1481 = vand.u32 %v926, 4294901760
    %1482 = vmatpush1.msra.mxu0 %v1481
    %1483 = vmatprep.subr.mxu0 0.0
    %v1484 = vand.u32 %v925, 4294901760
    %1485 = vmatpush1.msra.mxu0 %v1484
    %1486 = vmatprep.subr.mxu0 0.0
    %v1487 = vand.u32 %v924, 4294901760
    %1488 = vmatpush1.msra.mxu0 %v1487
    %1489 = vmatprep.subr.mxu0 0.0
    %v1490 = vand.u32 %v923, 4294901760
    %1491 = vmatpush1.msra.mxu0 %v1490
    %1492 = vmatprep.subr.mxu0 0.0
    %v1493 = vand.u32 %v954, 4294901760
    %1494 = vmatpush2.msra.mxu0 %v1493
    %1495 = vmatprep.subr.mxu0 0.0
    %v1496 = vand.u32 %v953, 4294901760
    %1497 = vmatpush2.msra.mxu0 %v1496
    %1498 = vmatprep.subr.mxu0 0.0
    %v1499 = vand.u32 %v952, 4294901760
    %1500 = vmatpush2.msra.mxu0 %v1499
    %1501 = vmatprep.subr.mxu0 0.0
    %v1502 = vand.u32 %v951, 4294901760
    %1503 = vmatpush2.msra.mxu0 %v1502
    %1504 = vmatprep.subr.mxu0 0.0
    %v1505 = vand.u32 %v950, 4294901760
    %1506 = vmatpush2.msra.mxu0 %v1505
    %1507 = vmatprep.subr.mxu0 0.0
    %v1508 = vand.u32 %v949, 4294901760
    %1509 = vmatpush2.msra.mxu0 %v1508
    %1510 = vmatprep.subr.mxu0 0.0
    %v1511 = vand.u32 %v948, 4294901760
    %1512 = vmatpush2.msra.mxu0 %v1511
    %1513 = vmatprep.subr.mxu0 0.0
    %v1514 = vand.u32 %v947, 4294901760
    %1515 = vmatpush2.msra.mxu0 %v1514
    %1516 = vmatprep.subr.mxu0 0.0
    %v1517 = vand.u32 %v946, 4294901760
    %1518 = vmatpush2.msra.mxu0 %v1517
    %1519 = vmatprep.subr.mxu0 0.0
    %v1520 = vand.u32 %v945, 4294901760
    %1521 = vmatpush2.msra.mxu0 %v1520
    %1522 = vmatprep.subr.mxu0 0.0
    %v1523 = vand.u32 %v944, 4294901760
    %1524 = vmatpush2.msra.mxu0 %v1523
    %1525 = vmatprep.subr.mxu0 0.0
    %v1526 = vand.u32 %v943, 4294901760
    %1527 = vmatpush2.msra.mxu0 %v1526
    %1528 = vmatprep.subr.mxu0 0.0
    %v1529 = vand.u32 %v942, 4294901760
    %1530 = vmatpush2.msra.mxu0 %v1529
    %1531 = vmatprep.subr.mxu0 0.0
    %v1532 = vand.u32 %v941, 4294901760
    %1533 = vmatpush2.msra.mxu0 %v1532
    %1534 = vmatprep.subr.mxu0 0.0
    %v1535 = vand.u32 %v940, 4294901760
    %1536 = vmatpush2.msra.mxu0 %v1535
    %1537 = vmatprep.subr.mxu0 0.0
    %v1538 = vand.u32 %v939, 4294901760
    %1539 = vmatpush2.msra.mxu0 %v1538
    %v1540 = vand.u32 %v922, 4294901760
    %v1541 = vsub.f32 %v922, %v1540
    %v1542 = vand.u32 %v1541, 4294901760
    %1543 = vmatprep.mubr.f32.mxu0 %v1542
    %v1544 = vand.u32 %v921, 4294901760
    %v1545 = vsub.f32 %v921, %v1544
    %v1546 = vand.u32 %v1545, 4294901760
    %1547 = vmatmul.mubr.f32.gmra.mxu0 %v1546
    %v1548 = vpop.f32.mrf.mxu0
    %v1549 = vadd.f32 %v1441, %v1548
    %v1550 = vpop.f32.mrf.mxu0
    %1551 = vdwg.mxu0
    %1552 = vmatprep.subr.mxu0 0.0
    %v1553 = vand.u32 %v938, 4294901760
    %v1554 = vsub.f32 %v938, %v1553
    %v1555 = vand.u32 %v1554, 4294901760
    %1556 = vmatpush1.msra.mxu0 %v1555
    %1557 = vmatprep.subr.mxu0 0.0
    %v1558 = vand.u32 %v937, 4294901760
    %v1559 = vsub.f32 %v937, %v1558
    %v1560 = vand.u32 %v1559, 4294901760
    %1561 = vmatpush1.msra.mxu0 %v1560
    %1562 = vmatprep.subr.mxu0 0.0
    %v1563 = vand.u32 %v936, 4294901760
    %v1564 = vsub.f32 %v936, %v1563
    %v1565 = vand.u32 %v1564, 4294901760
    %1566 = vmatpush1.msra.mxu0 %v1565
    %1567 = vmatprep.subr.mxu0 0.0
    %v1568 = vand.u32 %v935, 4294901760
    %v1569 = vsub.f32 %v935, %v1568
    %v1570 = vand.u32 %v1569, 4294901760
    %1571 = vmatpush1.msra.mxu0 %v1570
    %1572 = vmatprep.subr.mxu0 0.0
    %v1573 = vand.u32 %v934, 4294901760
    %v1574 = vsub.f32 %v934, %v1573
    %v1575 = vand.u32 %v1574, 4294901760
    %1576 = vmatpush1.msra.mxu0 %v1575
    %1577 = vmatprep.subr.mxu0 0.0
    %v1578 = vand.u32 %v933, 4294901760
    %v1579 = vsub.f32 %v933, %v1578
    %v1580 = vand.u32 %v1579, 4294901760
    %1581 = vmatpush1.msra.mxu0 %v1580
    %1582 = vmatprep.subr.mxu0 0.0
    %v1583 = vand.u32 %v932, 4294901760
    %v1584 = vsub.f32 %v932, %v1583
    %v1585 = vand.u32 %v1584, 4294901760
    %1586 = vmatpush1.msra.mxu0 %v1585
    %1587 = vmatprep.subr.mxu0 0.0
    %v1588 = vand.u32 %v931, 4294901760
    %v1589 = vsub.f32 %v931, %v1588
    %v1590 = vand.u32 %v1589, 4294901760
    %1591 = vmatpush1.msra.mxu0 %v1590
    %1592 = vmatprep.subr.mxu0 0.0
    %v1593 = vand.u32 %v930, 4294901760
    %v1594 = vsub.f32 %v930, %v1593
    %v1595 = vand.u32 %v1594, 4294901760
    %1596 = vmatpush1.msra.mxu0 %v1595
    %1597 = vmatprep.subr.mxu0 0.0
    %v1598 = vand.u32 %v929, 4294901760
    %v1599 = vsub.f32 %v929, %v1598
    %v1600 = vand.u32 %v1599, 4294901760
    %1601 = vmatpush1.msra.mxu0 %v1600
    %1602 = vmatprep.subr.mxu0 0.0
    %v1603 = vand.u32 %v928, 4294901760
    %v1604 = vsub.f32 %v928, %v1603
    %v1605 = vand.u32 %v1604, 4294901760
    %1606 = vmatpush1.msra.mxu0 %v1605
    %1607 = vmatprep.subr.mxu0 0.0
    %v1608 = vand.u32 %v927, 4294901760
    %v1609 = vsub.f32 %v927, %v1608
    %v1610 = vand.u32 %v1609, 4294901760
    %1611 = vmatpush1.msra.mxu0 %v1610
    %1612 = vmatprep.subr.mxu0 0.0
    %v1613 = vand.u32 %v926, 4294901760
    %v1614 = vsub.f32 %v926, %v1613
    %v1615 = vand.u32 %v1614, 4294901760
    %1616 = vmatpush1.msra.mxu0 %v1615
    %1617 = vmatprep.subr.mxu0 0.0
    %v1618 = vand.u32 %v925, 4294901760
    %v1619 = vsub.f32 %v925, %v1618
    %v1620 = vand.u32 %v1619, 4294901760
    %1621 = vmatpush1.msra.mxu0 %v1620
    %1622 = vmatprep.subr.mxu0 0.0
    %v1623 = vand.u32 %v924, 4294901760
    %v1624 = vsub.f32 %v924, %v1623
    %v1625 = vand.u32 %v1624, 4294901760
    %1626 = vmatpush1.msra.mxu0 %v1625
    %1627 = vmatprep.subr.mxu0 0.0
    %v1628 = vand.u32 %v923, 4294901760
    %v1629 = vsub.f32 %v923, %v1628
    %v1630 = vand.u32 %v1629, 4294901760
    %1631 = vmatpush1.msra.mxu0 %v1630
    %1632 = vmatprep.subr.mxu0 0.0
    %v1633 = vand.u32 %v954, 4294901760
    %v1634 = vsub.f32 %v954, %v1633
    %v1635 = vand.u32 %v1634, 4294901760
    %1636 = vmatpush2.msra.mxu0 %v1635
    %1637 = vmatprep.subr.mxu0 0.0
    %v1638 = vand.u32 %v953, 4294901760
    %v1639 = vsub.f32 %v953, %v1638
    %v1640 = vand.u32 %v1639, 4294901760
    %1641 = vmatpush2.msra.mxu0 %v1640
    %1642 = vmatprep.subr.mxu0 0.0
    %v1643 = vand.u32 %v952, 4294901760
    %v1644 = vsub.f32 %v952, %v1643
    %v1645 = vand.u32 %v1644, 4294901760
    %1646 = vmatpush2.msra.mxu0 %v1645
    %1647 = vmatprep.subr.mxu0 0.0
    %v1648 = vand.u32 %v951, 4294901760
    %v1649 = vsub.f32 %v951, %v1648
    %v1650 = vand.u32 %v1649, 4294901760
    %1651 = vmatpush2.msra.mxu0 %v1650
    %1652 = vmatprep.subr.mxu0 0.0
    %v1653 = vand.u32 %v950, 4294901760
    %v1654 = vsub.f32 %v950, %v1653
    %v1655 = vand.u32 %v1654, 4294901760
    %1656 = vmatpush2.msra.mxu0 %v1655
    %1657 = vmatprep.subr.mxu0 0.0
    %v1658 = vand.u32 %v949, 4294901760
    %v1659 = vsub.f32 %v949, %v1658
    %v1660 = vand.u32 %v1659, 4294901760
    %1661 = vmatpush2.msra.mxu0 %v1660
    %1662 = vmatprep.subr.mxu0 0.0
    %v1663 = vand.u32 %v948, 4294901760
    %v1664 = vsub.f32 %v948, %v1663
    %v1665 = vand.u32 %v1664, 4294901760
    %1666 = vmatpush2.msra.mxu0 %v1665
    %1667 = vmatprep.subr.mxu0 0.0
    %v1668 = vand.u32 %v947, 4294901760
    %v1669 = vsub.f32 %v947, %v1668
    %v1670 = vand.u32 %v1669, 4294901760
    %1671 = vmatpush2.msra.mxu0 %v1670
    %1672 = vmatprep.subr.mxu0 0.0
    %v1673 = vand.u32 %v946, 4294901760
    %v1674 = vsub.f32 %v946, %v1673
    %v1675 = vand.u32 %v1674, 4294901760
    %1676 = vmatpush2.msra.mxu0 %v1675
    %1677 = vmatprep.subr.mxu0 0.0
    %v1678 = vand.u32 %v945, 4294901760
    %v1679 = vsub.f32 %v945, %v1678
    %v1680 = vand.u32 %v1679, 4294901760
    %1681 = vmatpush2.msra.mxu0 %v1680
    %1682 = vmatprep.subr.mxu0 0.0
    %v1683 = vand.u32 %v944, 4294901760
    %v1684 = vsub.f32 %v944, %v1683
    %v1685 = vand.u32 %v1684, 4294901760
    %1686 = vmatpush2.msra.mxu0 %v1685
    %1687 = vmatprep.subr.mxu0 0.0
    %v1688 = vand.u32 %v943, 4294901760
    %v1689 = vsub.f32 %v943, %v1688
    %v1690 = vand.u32 %v1689, 4294901760
    %1691 = vmatpush2.msra.mxu0 %v1690
    %1692 = vmatprep.subr.mxu0 0.0
    %v1693 = vand.u32 %v942, 4294901760
    %v1694 = vsub.f32 %v942, %v1693
    %v1695 = vand.u32 %v1694, 4294901760
    %1696 = vmatpush2.msra.mxu0 %v1695
    %1697 = vmatprep.subr.mxu0 0.0
    %v1698 = vand.u32 %v941, 4294901760
    %v1699 = vsub.f32 %v941, %v1698
    %v1700 = vand.u32 %v1699, 4294901760
    %1701 = vmatpush2.msra.mxu0 %v1700
    %1702 = vmatprep.subr.mxu0 0.0
    %v1703 = vand.u32 %v940, 4294901760
    %v1704 = vsub.f32 %v940, %v1703
    %v1705 = vand.u32 %v1704, 4294901760
    %1706 = vmatpush2.msra.mxu0 %v1705
    %1707 = vmatprep.subr.mxu0 0.0
    %v1708 = vand.u32 %v939, 4294901760
    %v1709 = vsub.f32 %v939, %v1708
    %v1710 = vand.u32 %v1709, 4294901760
    %1711 = vmatpush2.msra.mxu0 %v1710
    %v1712 = vand.u32 %v922, 4294901760
    %1713 = vmatprep.mubr.f32.mxu0 %v1712
    %v1714 = vand.u32 %v921, 4294901760
    %1715 = vmatmul.mubr.f32.gmra.mxu0 %v1714
    %v1716 = vpop.f32.mrf.mxu0
    %v1717 = vadd.f32 %v1549, %v1716
    %v1718 = vpop.f32.mrf.mxu0
    %1719 = vdwg.mxu0
    %1720 = vmatprep.subr.mxu0 0.0
    %v1721 = vand.u32 %v938, 4294901760
    %1722 = vmatpush1.msra.mxu0 %v1721
    %1723 = vmatprep.subr.mxu0 0.0
    %v1724 = vand.u32 %v937, 4294901760
    %1725 = vmatpush1.msra.mxu0 %v1724
    %1726 = vmatprep.subr.mxu0 0.0
    %v1727 = vand.u32 %v936, 4294901760
    %1728 = vmatpush1.msra.mxu0 %v1727
    %1729 = vmatprep.subr.mxu0 0.0
    %v1730 = vand.u32 %v935, 4294901760
    %1731 = vmatpush1.msra.mxu0 %v1730
    %1732 = vmatprep.subr.mxu0 0.0
    %v1733 = vand.u32 %v934, 4294901760
    %1734 = vmatpush1.msra.mxu0 %v1733
    %1735 = vmatprep.subr.mxu0 0.0
    %v1736 = vand.u32 %v933, 4294901760
    %1737 = vmatpush1.msra.mxu0 %v1736
    %1738 = vmatprep.subr.mxu0 0.0
    %v1739 = vand.u32 %v932, 4294901760
    %1740 = vmatpush1.msra.mxu0 %v1739
    %1741 = vmatprep.subr.mxu0 0.0
    %v1742 = vand.u32 %v931, 4294901760
    %1743 = vmatpush1.msra.mxu0 %v1742
    %1744 = vmatprep.subr.mxu0 0.0
    %v1745 = vand.u32 %v930, 4294901760
    %1746 = vmatpush1.msra.mxu0 %v1745
    %1747 = vmatprep.subr.mxu0 0.0
    %v1748 = vand.u32 %v929, 4294901760
    %1749 = vmatpush1.msra.mxu0 %v1748
    %1750 = vmatprep.subr.mxu0 0.0
    %v1751 = vand.u32 %v928, 4294901760
    %1752 = vmatpush1.msra.mxu0 %v1751
    %1753 = vmatprep.subr.mxu0 0.0
    %v1754 = vand.u32 %v927, 4294901760
    %1755 = vmatpush1.msra.mxu0 %v1754
    %1756 = vmatprep.subr.mxu0 0.0
    %v1757 = vand.u32 %v926, 4294901760
    %1758 = vmatpush1.msra.mxu0 %v1757
    %1759 = vmatprep.subr.mxu0 0.0
    %v1760 = vand.u32 %v925, 4294901760
    %1761 = vmatpush1.msra.mxu0 %v1760
    %1762 = vmatprep.subr.mxu0 0.0
    %v1763 = vand.u32 %v924, 4294901760
    %1764 = vmatpush1.msra.mxu0 %v1763
    %1765 = vmatprep.subr.mxu0 0.0
    %v1766 = vand.u32 %v923, 4294901760
    %1767 = vmatpush1.msra.mxu0 %v1766
    %1768 = vmatprep.subr.mxu0 0.0
    %v1769 = vand.u32 %v954, 4294901760
    %1770 = vmatpush2.msra.mxu0 %v1769
    %1771 = vmatprep.subr.mxu0 0.0
    %v1772 = vand.u32 %v953, 4294901760
    %1773 = vmatpush2.msra.mxu0 %v1772
    %1774 = vmatprep.subr.mxu0 0.0
    %v1775 = vand.u32 %v952, 4294901760
    %1776 = vmatpush2.msra.mxu0 %v1775
    %1777 = vmatprep.subr.mxu0 0.0
    %v1778 = vand.u32 %v951, 4294901760
    %1779 = vmatpush2.msra.mxu0 %v1778
    %1780 = vmatprep.subr.mxu0 0.0
    %v1781 = vand.u32 %v950, 4294901760
    %1782 = vmatpush2.msra.mxu0 %v1781
    %1783 = vmatprep.subr.mxu0 0.0
    %v1784 = vand.u32 %v949, 4294901760
    %1785 = vmatpush2.msra.mxu0 %v1784
    %1786 = vmatprep.subr.mxu0 0.0
    %v1787 = vand.u32 %v948, 4294901760
    %1788 = vmatpush2.msra.mxu0 %v1787
    %1789 = vmatprep.subr.mxu0 0.0
    %v1790 = vand.u32 %v947, 4294901760
    %1791 = vmatpush2.msra.mxu0 %v1790
    %1792 = vmatprep.subr.mxu0 0.0
    %v1793 = vand.u32 %v946, 4294901760
    %1794 = vmatpush2.msra.mxu0 %v1793
    %1795 = vmatprep.subr.mxu0 0.0
    %v1796 = vand.u32 %v945, 4294901760
    %1797 = vmatpush2.msra.mxu0 %v1796
    %1798 = vmatprep.subr.mxu0 0.0
    %v1799 = vand.u32 %v944, 4294901760
    %1800 = vmatpush2.msra.mxu0 %v1799
    %1801 = vmatprep.subr.mxu0 0.0
    %v1802 = vand.u32 %v943, 4294901760
    %1803 = vmatpush2.msra.mxu0 %v1802
    %1804 = vmatprep.subr.mxu0 0.0
    %v1805 = vand.u32 %v942, 4294901760
    %1806 = vmatpush2.msra.mxu0 %v1805
    %1807 = vmatprep.subr.mxu0 0.0
    %v1808 = vand.u32 %v941, 4294901760
    %1809 = vmatpush2.msra.mxu0 %v1808
    %1810 = vmatprep.subr.mxu0 0.0
    %v1811 = vand.u32 %v940, 4294901760
    %1812 = vmatpush2.msra.mxu0 %v1811
    %1813 = vmatprep.subr.mxu0 0.0
    %v1814 = vand.u32 %v939, 4294901760
    %1815 = vmatpush2.msra.mxu0 %v1814
    %v1816 = vand.u32 %v922, 4294901760
    %1817 = vmatprep.mubr.f32.mxu0 %v1816
    %v1818 = vand.u32 %v921, 4294901760
    %1819 = vmatmul.mubr.f32.gmra.mxu0 %v1818
    %v1820 = vpop.f32.mrf.mxu0
    %v1821 = vadd.f32 %v1717, %v1820
    %v1822 = vpop.f32.mrf.mxu0
    %1823 = vdwg.mxu0
    %v1824 = vmul.f32 %v1821, 0.5
    %v1825 = vtanh.pop %v1824
    %v1826 = vmul.f32 %v1825, 0.5
    %v1827 = vadd.f32 %v1826, 0.5
    %vm1828 = vcmask 519168
    %1829 = vst.msk [vmem:[#allocation2] sm:$0xf] %vm1828, %v1827
    // Predicated region
    $region22: #{tpu_custom_call.1} parent=1 // pred_check
      _
    $region23: #{tpu_custom_call.1} parent=1 // pred_check_branch
      %1831 = sbr.rel (0) target = $region25
    $region24: #{tpu_custom_call.1} parent=1 // pred_region
      %s1833 = ssub.s32 64, 64
      %1834 = vsyncadd [#allocation3], %s1833
      %s1836 = sshll.u32 [#allocation2], 4
      %s1837 = int_to_ptr.vmem [resolvable:$true] %s1836
      %1839 = dma.vmem_to_hbm [thread:$0]  %s1837, 64, %s5, [#allocation3]
    $region25: #{tpu_custom_call.1} parent=1 // pred_fallthru
      _
    // Predicated region
    $region26: #{tpu_custom_call.1} parent=1 // pred_check
      _
    $region27: #{tpu_custom_call.1} parent=1 // pred_check_branch
      %1841 = sbr.rel (0) target = $region29
    $region28: #{tpu_custom_call.1} parent=1 // pred_region
      %1842 = dma.done [#allocation3], 64
    $region29: #{tpu_custom_call.1} parent=1 // pred_fallthru
      _
    %1843 = vsyncpa [#allocation3], 1

</llo_original>
